<compile_context>
chip_gen: v7x
topology: tpu7x:2x2x1
jax: 0.10.0
libtpu: 0.0.40
codegen_flags: <defaults>
</compile_context>

<pallas_src>
import jax
import jax.numpy as jnp
from jax import lax
from jax.experimental import pallas as pl
from jax.experimental.pallas import tpu as pltpu

# ---------------- synthetic "args" ----------------
HIDDEN_DIM = 32
N_LAYERS = 2
N_TEST = 10
N_QUESTIONS = 20
N_TAG = 7          # note: in __init__ embedding_tag is overwritten by the grade table
N_GRADE = 5
N_CONT = 3
CONT_COL = ["cont0", "cont1", "cont2"]
B, S = 2, 8
HC = HIDDEN_DIM // 3   # 10
C4 = 4 * HC            # 40

# rows of the packed vector slab (all [1, H] f32)
_R_B_CATE, _R_G_CATE, _R_BE_CATE = 0, 1, 2
_R_B_CONT, _R_G_CONT, _R_BE_CONT = 3, 4, 5
_R_B_COMB, _R_G_COMB, _R_BE_COMB = 6, 7, 8
_R_W_FC = 9
_R_W_CONT0 = 10            # rows 10..12 = w_cont (used on the VPU broadcast-MAC path)
_N_VEC_ROWS = 10 + N_CONT


def _layer_norm(x, gamma, beta, eps=1e-5):
    mu = jnp.mean(x, axis=-1, keepdims=True)
    var = jnp.mean((x - mu) ** 2, axis=-1, keepdims=True)
    return (x - mu) * lax.rsqrt(var + eps) * gamma + beta


# ---------------- Pallas kernel ----------------
def dkt_fused_kernel(act_ref, wproj_ref, wlstm_ref, vec_ref, blstm_ref, bfc_ref,
                     preds_ref):
    # act_ref:   [S*B, 4*HC + n_cont] f32, time-major rows (row = s*B + b)
    # wproj_ref: [4*HC + 2H, H] bf16  (rows 0:4HC = w_cate, rows 4HC: = w_comb)
    # wlstm_ref: [L, 2H, 4H] bf16     ([W_ih ; W_hh] per layer, gate order i,f,g,o,
    #                                  g-columns pre-scaled by 2)
    # vec_ref:   [13, H] f32 packed vectors, blstm_ref: [L, 4H] f32 (g slice x2)
    # bfc_ref:   [1] f32 in SMEM, preds_ref: [S*B, 1] f32
    H = HIDDEN_DIM
    Bq, Sq = B, S

    act = act_ref[...]                                        # [S*B, C4 + n_cont]
    vec = vec_ref[...]                                        # [13, H]

    # ---- cate_proj: Linear(4*HC -> H) + LayerNorm (one bf16 MXU matmul) ----
    cate = jnp.dot(act[:, 0:C4].astype(jnp.bfloat16), wproj_ref[0:C4, :],
                   preferred_element_type=jnp.float32) + vec[_R_B_CATE:_R_B_CATE + 1, :]
    cate = _layer_norm(cate, vec[_R_G_CATE:_R_G_CATE + 1, :],
                       vec[_R_BE_CATE:_R_BE_CATE + 1, :])

    # ---- embedding_cont: Linear(n_cont -> H) as n_cont VPU broadcast-MACs (f32) ----
    contp = vec[_R_B_CONT:_R_B_CONT + 1, :]
    for k in range(N_CONT):
        contp = contp + act[:, C4 + k:C4 + k + 1] * vec[_R_W_CONT0 + k:_R_W_CONT0 + k + 1, :]
    contp = _layer_norm(contp, vec[_R_G_CONT:_R_G_CONT + 1, :],
                        vec[_R_BE_CONT:_R_BE_CONT + 1, :])

    # ---- comb_proj: ReLU -> Linear(2H -> H) -> LayerNorm (concat-free split dot) ----
    comb = (jnp.dot(jnp.maximum(cate, 0.0).astype(jnp.bfloat16),
                    wproj_ref[C4:C4 + H, :], preferred_element_type=jnp.float32)
            + jnp.dot(jnp.maximum(contp, 0.0).astype(jnp.bfloat16),
                      wproj_ref[C4 + H:C4 + 2 * H, :], preferred_element_type=jnp.float32)
            + vec[_R_B_COMB:_R_B_COMB + 1, :])
    x = _layer_norm(comb, vec[_R_G_COMB:_R_G_COMB + 1, :],
                    vec[_R_BE_COMB:_R_BE_COMB + 1, :])        # [S*B, H] time-major, f32

    # ---- wavefront-interleaved 2-layer LSTM, fully unrolled ----
    w_ih0 = wlstm_ref[0, 0:H, :]                              # [H, 4H]  bf16
    w_hh0 = wlstm_ref[0, H:2 * H, :]                          # [H, 4H]  bf16
    w_l1 = wlstm_ref[1]                                       # [2H, 4H] bf16
    b0 = blstm_ref[0:1, :]                                    # [1, 4H]  f32
    b1 = blstm_ref[1:2, :]

    # layer-0 input->hidden projection hoisted out of the recurrence (one matmul)
    gx0 = jnp.dot(x.astype(jnp.bfloat16), w_ih0,
                  preferred_element_type=jnp.float32) + b0    # [S*B, 4H]

    def cell(g_all, c_prev):
        # one whole-vreg sigmoid; g-gate pre-activation was pre-scaled by 2 so that
        # tanh(z) = 2*sigmoid(2z) - 1 is a single VPU FMA on the g lanes.
        sg = jax.nn.sigmoid(g_all)                            # [B, 4H], single EUP pass
        i_g = sg[:, 0:H]
        f_g = sg[:, H:2 * H]
        g_g = 2.0 * sg[:, 2 * H:3 * H] - 1.0
        o_g = sg[:, 3 * H:4 * H]
        c_new = f_g * c_prev + i_g * g_g
        h_new = o_g * jnp.tanh(c_new)
        return h_new, c_new

    z = jnp.zeros((Bq, H), jnp.float32)
    h0, c0, h1, c1 = z, z, z, z
    h1_all = []
    for t in range(Sq):                                       # static unroll
        # layer 0, step t  (depends only on h0_{t-1})
        g0 = gx0[t * Bq:(t + 1) * Bq, :] + jnp.dot(
            h0.astype(jnp.bfloat16), w_hh0, preferred_element_type=jnp.float32)
        h0, c0 = cell(g0, c0)
        # layer 1, step t  (depends on h0_t and h1_{t-1}); independent of layer-0 step
        # t+1, so the two per-step dots overlap in the MXU across the unrolled body.
        hcat = jnp.concatenate([h0, h1], axis=-1).astype(jnp.bfloat16)   # [B, 2H]
        g1 = jnp.dot(hcat, w_l1, preferred_element_type=jnp.float32) + b1
        h1, c1 = cell(g1, c1)
        h1_all.append(h1)

    # ---- fc head (Linear H -> 1) + sigmoid, once, outside the recurrence ----
    h_all = jnp.concatenate(h1_all, axis=0)                   # [S*B, H] time-major
    wfc = vec[_R_W_FC:_R_W_FC + 1, :]                         # [1, H]
    logits = jnp.sum(h_all * wfc, axis=-1, keepdims=True) + bfc_ref[0]
    preds_ref[...] = jax.nn.sigmoid(logits)                   # [S*B, 1]


# ---------------- wrapper ----------------
def forward(inputs, p):
    interaction = inputs["interaction"]
    Bq, Sq = interaction.shape

    # Time-major gathers: only the tiny int32 index arrays are transposed.
    e_int = jnp.take(p["emb_interaction"], interaction.T, axis=0)          # [S,B,HC]
    e_test = jnp.take(p["emb_test"], inputs["testId"].T, axis=0)
    e_q = jnp.take(p["emb_question"], inputs["assessmentItemID"].T, axis=0)
    e_tag = jnp.take(p["emb_tag"], inputs["KnowledgeTag"].T, axis=0)
    cont = jnp.stack([inputs[c].T for c in CONT_COL], axis=2)              # [S,B,n_cont]

    # single activation slab [S*B, 4*HC + n_cont], time-major rows
    act = jnp.concatenate([e_int, e_test, e_q, e_tag, cont], axis=2)
    act = act.reshape(Sq * Bq, C4 + N_CONT).astype(jnp.float32)

    # ----- packed weight slabs (in practice cached once; rebuilt per call here) -----
    wproj = jnp.concatenate([p["w_cate"], p["w_comb"]], axis=0).astype(jnp.bfloat16)

    def gscale(w):  # pre-scale the g-gate columns by 2 for tanh(x)=2*sigmoid(2x)-1
        return w.at[..., 2 * HIDDEN_DIM:3 * HIDDEN_DIM].multiply(2.0)

    wlstm = jnp.stack([
        jnp.concatenate([gscale(p["w_ih"][l]), gscale(p["w_hh"][l])], axis=0)
        for l in range(N_LAYERS)]).astype(jnp.bfloat16)                    # [L, 2H, 4H]
    blstm = gscale(p["b_lstm"][:, 0, :]).astype(jnp.float32)               # [L, 4H]

    vec = jnp.concatenate([
        p["b_cate"], p["g_cate"], p["beta_cate"],
        p["b_cont"], p["g_cont"], p["beta_cont"],
        p["b_comb"], p["g_comb"], p["beta_comb"],
        p["w_fc"], p["w_cont"]], axis=0).astype(jnp.float32)               # [13, H]

    bfc = p["b_fc"].reshape(1).astype(jnp.float32)                         # SMEM scalar

    vspec = pl.BlockSpec(memory_space=pltpu.MemorySpace.VMEM)
    sspec = pl.BlockSpec(memory_space=pltpu.MemorySpace.SMEM)
    out = pl.pallas_call(
        dkt_fused_kernel,
        out_shape=jax.ShapeDtypeStruct((Sq * Bq, 1), jnp.float32),
        in_specs=[vspec, vspec, vspec, vspec, vspec, sspec],
        out_specs=vspec,
    )(act, wproj, wlstm, vec, blstm, bfc)

    # 16-element transpose in the wrapper (kernel output is a time-major slab)
    return out.reshape(Sq, Bq).T                                           # [B, S]


# ---------------- pure-JAX reference (for sanity check) ----------------
def forward_ref(inputs, p):
    e_int = p["emb_interaction"][inputs["interaction"]]
    e_test = p["emb_test"][inputs["testId"]]
    e_q = p["emb_question"][inputs["assessmentItemID"]]
    e_tag = p["emb_tag"][inputs["KnowledgeTag"]]
    ecate = jnp.concatenate([e_int, e_test, e_q, e_tag], axis=2)
    cont = jnp.stack([inputs[c] for c in CONT_COL], axis=2)

    def ln(x, g, b):
        mu = jnp.mean(x, -1, keepdims=True)
        var = jnp.mean((x - mu) ** 2, -1, keepdims=True)
        return (x - mu) / jnp.sqrt(var + 1e-5) * g + b

    cate = ln(ecate @ p["w_cate"] + p["b_cate"], p["g_cate"], p["beta_cate"])
    contp = ln(cont @ p["w_cont"] + p["b_cont"], p["g_cont"], p["beta_cont"])
    comb = jax.nn.relu(jnp.concatenate([cate, contp], axis=2))
    X = ln(comb @ p["w_comb"] + p["b_comb"], p["g_comb"], p["beta_comb"])

    Bq, Sq, H = X.shape
    h_in = X
    for l in range(N_LAYERS):
        h = jnp.zeros((Bq, H), jnp.float32)
        c = jnp.zeros((Bq, H), jnp.float32)
        outs = []
        for t in range(Sq):
            gates = h_in[:, t] @ p["w_ih"][l] + h @ p["w_hh"][l] + p["b_lstm"][l]
            i = jax.nn.sigmoid(gates[:, 0:H])
            f = jax.nn.sigmoid(gates[:, H:2 * H])
            g = jnp.tanh(gates[:, 2 * H:3 * H])
            o = jax.nn.sigmoid(gates[:, 3 * H:4 * H])
            c = f * c + i * g
            h = o * jnp.tanh(c)
            outs.append(h)
        h_in = jnp.stack(outs, axis=1)
    logits = jnp.einsum("bsh,h->bs", h_in, p["w_fc"][0]) + p["b_fc"][0, 0]
    return jax.nn.sigmoid(logits)


# ---------------- deterministic parameter init ----------------
def init_params(key):
    ks = jax.random.split(key, 16)

    def u(k, shape, fan_in):
        bound = 1.0 / float(fan_in) ** 0.5
        return jax.random.uniform(k, shape, jnp.float32, -bound, bound)

    p = {}
    p["emb_interaction"] = jax.random.normal(ks[0], (3, HC), jnp.float32)
    p["emb_test"] = jax.random.normal(ks[1], (N_TEST + 1, HC), jnp.float32)
    p["emb_question"] = jax.random.normal(ks[2], (N_QUESTIONS + 1, HC), jnp.float32)
    # second assignment of self.embedding_tag wins -> grade-sized table
    p["emb_tag"] = jax.random.normal(ks[3], (N_GRADE + 1, HC), jnp.float32)

    p["w_cate"] = u(ks[4], (C4, HIDDEN_DIM), C4)
    p["b_cate"] = u(ks[5], (1, HIDDEN_DIM), C4)
    p["g_cate"] = jnp.ones((1, HIDDEN_DIM), jnp.float32)
    p["beta_cate"] = jnp.zeros((1, HIDDEN_DIM), jnp.float32)

    p["w_cont"] = u(ks[6], (N_CONT, HIDDEN_DIM), N_CONT)
    p["b_cont"] = u(ks[7], (1, HIDDEN_DIM), N_CONT)
    p["g_cont"] = jnp.ones((1, HIDDEN_DIM), jnp.float32)
    p["beta_cont"] = jnp.zeros((1, HIDDEN_DIM), jnp.float32)

    p["w_comb"] = u(ks[8], (2 * HIDDEN_DIM, HIDDEN_DIM), 2 * HIDDEN_DIM)
    p["b_comb"] = u(ks[9], (1, HIDDEN_DIM), 2 * HIDDEN_DIM)
    p["g_comb"] = jnp.ones((1, HIDDEN_DIM), jnp.float32)
    p["beta_comb"] = jnp.zeros((1, HIDDEN_DIM), jnp.float32)

    # LSTM weights, PyTorch gate order (i, f, g, o), stored transposed for x @ W
    kk = jax.random.split(ks[10], 4 * N_LAYERS)
    wih, whh, bb = [], [], []
    for l in range(N_LAYERS):
        wih.append(u(kk[4 * l + 0], (HIDDEN_DIM, 4 * HIDDEN_DIM), HIDDEN_DIM))
        whh.append(u(kk[4 * l + 1], (HIDDEN_DIM, 4 * HIDDEN_DIM), HIDDEN_DIM))
        b_ih = u(kk[4 * l + 2], (1, 4 * HIDDEN_DIM), HIDDEN_DIM)
        b_hh = u(kk[4 * l + 3], (1, 4 * HIDDEN_DIM), HIDDEN_DIM)
        bb.append(b_ih + b_hh)
    p["w_ih"] = jnp.stack(wih)          # [L, H, 4H]
    p["w_hh"] = jnp.stack(whh)          # [L, H, 4H]
    p["b_lstm"] = jnp.stack(bb)         # [L, 1, 4H]

    p["w_fc"] = u(ks[11], (1, HIDDEN_DIM), HIDDEN_DIM)   # fc weight (row vector)
    p["b_fc"] = u(ks[12], (1, 1), HIDDEN_DIM)
    return p


if __name__ == "__main__":
    key = jax.random.PRNGKey(0)
    kp, ki = jax.random.split(key)
    params = init_params(kp)

    kk = jax.random.split(ki, 7)
    inputs = {
        "interaction": jax.random.randint(kk[0], (B, S), 0, 3),
        "testId": jax.random.randint(kk[1], (B, S), 0, N_TEST + 1),
        "assessmentItemID": jax.random.randint(kk[2], (B, S), 0, N_QUESTIONS + 1),
        "KnowledgeTag": jax.random.randint(kk[3], (B, S), 0, N_GRADE + 1),
        "cont0": jax.random.normal(kk[4], (B, S), jnp.float32),
        "cont1": jax.random.normal(kk[5], (B, S), jnp.float32),
        "cont2": jax.random.normal(kk[6], (B, S), jnp.float32),
    }

    preds = forward(inputs, params)
    preds = jax.block_until_ready(preds)

    assert preds.shape == (B, S), preds.shape
    assert bool(jnp.all(jnp.isfinite(preds)))

    # f32 "highest" reference; tolerance relaxed because the kernel uses bf16 MXU
    # operands (f32 accumulation) on the matmuls, per the perf review.
    with jax.default_matmul_precision("highest"):
        ref = forward_ref(inputs, params)
    ref = jax.block_until_ready(ref)
    max_err = float(jnp.max(jnp.abs(preds - ref)))
    assert max_err < 2e-2, f"max abs err vs reference: {max_err}"

    print("KERNEL_OK")
</pallas_src>

<mosaic_0001>
module attributes {stable_mosaic.version = 11 : i64} {
  func.func @dkt_fused_kernel(%arg0: memref<16x43xf32, #tpu.memory_space<vmem>>, %arg1: memref<104x32xbf16, #tpu.memory_space<vmem>>, %arg2: memref<2x64x128xbf16, #tpu.memory_space<vmem>>, %arg3: memref<13x32xf32, #tpu.memory_space<vmem>>, %arg4: memref<2x128xf32, #tpu.memory_space<vmem>>, %arg5: memref<1xf32, #tpu.memory_space<smem>>, %arg6: memref<16x1xf32, #tpu.memory_space<vmem>>) attributes {dimension_semantics = [], scalar_prefetch = 0 : i64, scratch_operands = 0 : i64, tpu.core_type = #tpu.core_type<tc>} {
    %c0 = arith.constant 0 : index
    %c0_0 = arith.constant 0 : index
    %0 = vector.load %arg0[%c0, %c0_0] : memref<16x43xf32, #tpu.memory_space<vmem>>, vector<16x43xf32>
    %c0_1 = arith.constant 0 : index
    %c0_2 = arith.constant 0 : index
    %1 = vector.load %arg3[%c0_1, %c0_2] : memref<13x32xf32, #tpu.memory_space<vmem>>, vector<13x32xf32>
    %2 = vector.extract_strided_slice %0 {offsets = [0, 0], sizes = [16, 40], strides = [1, 1]} : vector<16x43xf32> to vector<16x40xf32>
    %3 = arith.truncf %2 : vector<16x40xf32> to vector<16x40xbf16>
    %c0_3 = arith.constant 0 : index
    %c0_4 = arith.constant 0 : index
    %4 = vector.load %arg1[%c0_3, %c0_4] : memref<104x32xbf16, #tpu.memory_space<vmem>>, vector<40x32xbf16>
    %cst = arith.constant dense<0.000000e+00> : vector<16x32xf32>
    %5 = tpu.matmul %3, %4, %cst {dimension_numbers = #tpu.dot_dimension_numbers<[1], [0], [0], [1], [0, 0, 1, 1], [], []>} : vector<16x40xbf16>, vector<40x32xbf16>, vector<16x32xf32> -> vector<16x32xf32>
    %6 = vector.extract_strided_slice %1 {offsets = [0, 0], sizes = [1, 32], strides = [1, 1]} : vector<13x32xf32> to vector<1x32xf32>
    %7 = vector.broadcast %6 : vector<1x32xf32> to vector<16x32xf32>
    %8 = arith.addf %5, %7 : vector<16x32xf32>
    %9 = vector.extract_strided_slice %1 {offsets = [1, 0], sizes = [1, 32], strides = [1, 1]} : vector<13x32xf32> to vector<1x32xf32>
    %10 = vector.extract_strided_slice %1 {offsets = [2, 0], sizes = [1, 32], strides = [1, 1]} : vector<13x32xf32> to vector<1x32xf32>
    %cst_5 = arith.constant dense<0.000000e+00> : vector<16xf32>
    %11 = vector.multi_reduction <add>, %8, %cst_5 [1] : vector<16x32xf32> to vector<16xf32>
    %12 = vector.shape_cast %11 : vector<16xf32> to vector<16x1xf32>
    %cst_6 = arith.constant 3.200000e+01 : f32
    %13 = vector.broadcast %cst_6 : f32 to vector<16x1xf32>
    %14 = arith.divf %12, %13 : vector<16x1xf32>
    %15 = vector.broadcast %14 : vector<16x1xf32> to vector<16x32xf32>
    %16 = arith.subf %8, %15 : vector<16x32xf32>
    %17 = arith.mulf %16, %16 : vector<16x32xf32>
    %cst_7 = arith.constant dense<0.000000e+00> : vector<16xf32>
    %18 = vector.multi_reduction <add>, %17, %cst_7 [1] : vector<16x32xf32> to vector<16xf32>
    %19 = vector.shape_cast %18 : vector<16xf32> to vector<16x1xf32>
    %cst_8 = arith.constant 3.200000e+01 : f32
    %20 = vector.broadcast %cst_8 : f32 to vector<16x1xf32>
    %21 = arith.divf %19, %20 : vector<16x1xf32>
    %22 = vector.broadcast %14 : vector<16x1xf32> to vector<16x32xf32>
    %23 = arith.subf %8, %22 : vector<16x32xf32>
    %cst_9 = arith.constant 9.99999974E-6 : f32
    %24 = vector.broadcast %cst_9 : f32 to vector<16x1xf32>
    %25 = arith.addf %21, %24 : vector<16x1xf32>
    %26 = math.rsqrt %25 : vector<16x1xf32>
    %27 = vector.broadcast %26 : vector<16x1xf32> to vector<16x32xf32>
    %28 = arith.mulf %23, %27 : vector<16x32xf32>
    %29 = vector.broadcast %9 : vector<1x32xf32> to vector<16x32xf32>
    %30 = arith.mulf %28, %29 : vector<16x32xf32>
    %31 = vector.broadcast %10 : vector<1x32xf32> to vector<16x32xf32>
    %32 = arith.addf %30, %31 : vector<16x32xf32>
    %33 = vector.extract_strided_slice %1 {offsets = [3, 0], sizes = [1, 32], strides = [1, 1]} : vector<13x32xf32> to vector<1x32xf32>
    %34 = vector.extract_strided_slice %0 {offsets = [0, 40], sizes = [16, 1], strides = [1, 1]} : vector<16x43xf32> to vector<16x1xf32>
    %35 = vector.extract_strided_slice %1 {offsets = [10, 0], sizes = [1, 32], strides = [1, 1]} : vector<13x32xf32> to vector<1x32xf32>
    %36 = vector.broadcast %34 : vector<16x1xf32> to vector<16x32xf32>
    %37 = vector.broadcast %35 : vector<1x32xf32> to vector<16x32xf32>
    %38 = arith.mulf %36, %37 : vector<16x32xf32>
    %39 = vector.broadcast %33 : vector<1x32xf32> to vector<16x32xf32>
    %40 = arith.addf %39, %38 : vector<16x32xf32>
    %41 = vector.extract_strided_slice %0 {offsets = [0, 41], sizes = [16, 1], strides = [1, 1]} : vector<16x43xf32> to vector<16x1xf32>
    %42 = vector.extract_strided_slice %1 {offsets = [11, 0], sizes = [1, 32], strides = [1, 1]} : vector<13x32xf32> to vector<1x32xf32>
    %43 = vector.broadcast %41 : vector<16x1xf32> to vector<16x32xf32>
    %44 = vector.broadcast %42 : vector<1x32xf32> to vector<16x32xf32>
    %45 = arith.mulf %43, %44 : vector<16x32xf32>
    %46 = arith.addf %40, %45 : vector<16x32xf32>
    %47 = vector.extract_strided_slice %0 {offsets = [0, 42], sizes = [16, 1], strides = [1, 1]} : vector<16x43xf32> to vector<16x1xf32>
    %48 = vector.extract_strided_slice %1 {offsets = [12, 0], sizes = [1, 32], strides = [1, 1]} : vector<13x32xf32> to vector<1x32xf32>
    %49 = vector.broadcast %47 : vector<16x1xf32> to vector<16x32xf32>
    %50 = vector.broadcast %48 : vector<1x32xf32> to vector<16x32xf32>
    %51 = arith.mulf %49, %50 : vector<16x32xf32>
    %52 = arith.addf %46, %51 : vector<16x32xf32>
    %53 = vector.extract_strided_slice %1 {offsets = [4, 0], sizes = [1, 32], strides = [1, 1]} : vector<13x32xf32> to vector<1x32xf32>
    %54 = vector.extract_strided_slice %1 {offsets = [5, 0], sizes = [1, 32], strides = [1, 1]} : vector<13x32xf32> to vector<1x32xf32>
    %cst_10 = arith.constant dense<0.000000e+00> : vector<16xf32>
    %55 = vector.multi_reduction <add>, %52, %cst_10 [1] : vector<16x32xf32> to vector<16xf32>
    %56 = vector.shape_cast %55 : vector<16xf32> to vector<16x1xf32>
    %cst_11 = arith.constant 3.200000e+01 : f32
    %57 = vector.broadcast %cst_11 : f32 to vector<16x1xf32>
    %58 = arith.divf %56, %57 : vector<16x1xf32>
    %59 = vector.broadcast %58 : vector<16x1xf32> to vector<16x32xf32>
    %60 = arith.subf %52, %59 : vector<16x32xf32>
    %61 = arith.mulf %60, %60 : vector<16x32xf32>
    %cst_12 = arith.constant dense<0.000000e+00> : vector<16xf32>
    %62 = vector.multi_reduction <add>, %61, %cst_12 [1] : vector<16x32xf32> to vector<16xf32>
    %63 = vector.shape_cast %62 : vector<16xf32> to vector<16x1xf32>
    %cst_13 = arith.constant 3.200000e+01 : f32
    %64 = vector.broadcast %cst_13 : f32 to vector<16x1xf32>
    %65 = arith.divf %63, %64 : vector<16x1xf32>
    %66 = vector.broadcast %58 : vector<16x1xf32> to vector<16x32xf32>
    %67 = arith.subf %52, %66 : vector<16x32xf32>
    %cst_14 = arith.constant 9.99999974E-6 : f32
    %68 = vector.broadcast %cst_14 : f32 to vector<16x1xf32>
    %69 = arith.addf %65, %68 : vector<16x1xf32>
    %70 = math.rsqrt %69 : vector<16x1xf32>
    %71 = vector.broadcast %70 : vector<16x1xf32> to vector<16x32xf32>
    %72 = arith.mulf %67, %71 : vector<16x32xf32>
    %73 = vector.broadcast %53 : vector<1x32xf32> to vector<16x32xf32>
    %74 = arith.mulf %72, %73 : vector<16x32xf32>
    %75 = vector.broadcast %54 : vector<1x32xf32> to vector<16x32xf32>
    %76 = arith.addf %74, %75 : vector<16x32xf32>
    %cst_15 = arith.constant 0.000000e+00 : f32
    %77 = vector.broadcast %cst_15 : f32 to vector<16x32xf32>
    %78 = arith.maximumf %32, %77 : vector<16x32xf32>
    %79 = arith.truncf %78 : vector<16x32xf32> to vector<16x32xbf16>
    %c40 = arith.constant 40 : index
    %c0_16 = arith.constant 0 : index
    %80 = vector.load %arg1[%c40, %c0_16] : memref<104x32xbf16, #tpu.memory_space<vmem>>, vector<32x32xbf16>
    %cst_17 = arith.constant dense<0.000000e+00> : vector<16x32xf32>
    %81 = tpu.matmul %79, %80, %cst_17 {dimension_numbers = #tpu.dot_dimension_numbers<[1], [0], [0], [1], [0, 0, 1, 1], [], []>} : vector<16x32xbf16>, vector<32x32xbf16>, vector<16x32xf32> -> vector<16x32xf32>
    %cst_18 = arith.constant 0.000000e+00 : f32
    %82 = vector.broadcast %cst_18 : f32 to vector<16x32xf32>
    %83 = arith.maximumf %76, %82 : vector<16x32xf32>
    %84 = arith.truncf %83 : vector<16x32xf32> to vector<16x32xbf16>
    %c72 = arith.constant 72 : index
    %c0_19 = arith.constant 0 : index
    %85 = vector.load %arg1[%c72, %c0_19] : memref<104x32xbf16, #tpu.memory_space<vmem>>, vector<32x32xbf16>
    %cst_20 = arith.constant dense<0.000000e+00> : vector<16x32xf32>
    %86 = tpu.matmul %84, %85, %cst_20 {dimension_numbers = #tpu.dot_dimension_numbers<[1], [0], [0], [1], [0, 0, 1, 1], [], []>} : vector<16x32xbf16>, vector<32x32xbf16>, vector<16x32xf32> -> vector<16x32xf32>
    %87 = arith.addf %81, %86 : vector<16x32xf32>
    %88 = vector.extract_strided_slice %1 {offsets = [6, 0], sizes = [1, 32], strides = [1, 1]} : vector<13x32xf32> to vector<1x32xf32>
    %89 = vector.broadcast %88 : vector<1x32xf32> to vector<16x32xf32>
    %90 = arith.addf %87, %89 : vector<16x32xf32>
    %91 = vector.extract_strided_slice %1 {offsets = [7, 0], sizes = [1, 32], strides = [1, 1]} : vector<13x32xf32> to vector<1x32xf32>
    %92 = vector.extract_strided_slice %1 {offsets = [8, 0], sizes = [1, 32], strides = [1, 1]} : vector<13x32xf32> to vector<1x32xf32>
    %cst_21 = arith.constant dense<0.000000e+00> : vector<16xf32>
    %93 = vector.multi_reduction <add>, %90, %cst_21 [1] : vector<16x32xf32> to vector<16xf32>
    %94 = vector.shape_cast %93 : vector<16xf32> to vector<16x1xf32>
    %cst_22 = arith.constant 3.200000e+01 : f32
    %95 = vector.broadcast %cst_22 : f32 to vector<16x1xf32>
    %96 = arith.divf %94, %95 : vector<16x1xf32>
    %97 = vector.broadcast %96 : vector<16x1xf32> to vector<16x32xf32>
    %98 = arith.subf %90, %97 : vector<16x32xf32>
    %99 = arith.mulf %98, %98 : vector<16x32xf32>
    %cst_23 = arith.constant dense<0.000000e+00> : vector<16xf32>
    %100 = vector.multi_reduction <add>, %99, %cst_23 [1] : vector<16x32xf32> to vector<16xf32>
    %101 = vector.shape_cast %100 : vector<16xf32> to vector<16x1xf32>
    %cst_24 = arith.constant 3.200000e+01 : f32
    %102 = vector.broadcast %cst_24 : f32 to vector<16x1xf32>
    %103 = arith.divf %101, %102 : vector<16x1xf32>
    %104 = vector.broadcast %96 : vector<16x1xf32> to vector<16x32xf32>
    %105 = arith.subf %90, %104 : vector<16x32xf32>
    %cst_25 = arith.constant 9.99999974E-6 : f32
    %106 = vector.broadcast %cst_25 : f32 to vector<16x1xf32>
    %107 = arith.addf %103, %106 : vector<16x1xf32>
    %108 = math.rsqrt %107 : vector<16x1xf32>
    %109 = vector.broadcast %108 : vector<16x1xf32> to vector<16x32xf32>
    %110 = arith.mulf %105, %109 : vector<16x32xf32>
    %111 = vector.broadcast %91 : vector<1x32xf32> to vector<16x32xf32>
    %112 = arith.mulf %110, %111 : vector<16x32xf32>
    %113 = vector.broadcast %92 : vector<1x32xf32> to vector<16x32xf32>
    %114 = arith.addf %112, %113 : vector<16x32xf32>
    %c0_26 = arith.constant 0 : index
    %c0_27 = arith.constant 0 : index
    %c0_28 = arith.constant 0 : index
    %115 = vector.load %arg2[%c0_26, %c0_27, %c0_28] : memref<2x64x128xbf16, #tpu.memory_space<vmem>>, vector<1x32x128xbf16>
    %116 = vector.shape_cast %115 : vector<1x32x128xbf16> to vector<32x128xbf16>
    %c0_29 = arith.constant 0 : index
    %c32 = arith.constant 32 : index
    %c0_30 = arith.constant 0 : index
    %117 = vector.load %arg2[%c0_29, %c32, %c0_30] : memref<2x64x128xbf16, #tpu.memory_space<vmem>>, vector<1x32x128xbf16>
    %118 = vector.shape_cast %117 : vector<1x32x128xbf16> to vector<32x128xbf16>
    %c1 = arith.constant 1 : index
    %c0_31 = arith.constant 0 : index
    %c0_32 = arith.constant 0 : index
    %119 = vector.load %arg2[%c1, %c0_31, %c0_32] : memref<2x64x128xbf16, #tpu.memory_space<vmem>>, vector<1x64x128xbf16>
    %120 = vector.shape_cast %119 : vector<1x64x128xbf16> to vector<64x128xbf16>
    %c0_33 = arith.constant 0 : index
    %c0_34 = arith.constant 0 : index
    %121 = vector.load %arg4[%c0_33, %c0_34] : memref<2x128xf32, #tpu.memory_space<vmem>>, vector<1x128xf32>
    %c1_35 = arith.constant 1 : index
    %c0_36 = arith.constant 0 : index
    %122 = vector.load %arg4[%c1_35, %c0_36] : memref<2x128xf32, #tpu.memory_space<vmem>>, vector<1x128xf32>
    %123 = arith.truncf %114 : vector<16x32xf32> to vector<16x32xbf16>
    %cst_37 = arith.constant dense<0.000000e+00> : vector<16x128xf32>
    %124 = tpu.matmul %123, %116, %cst_37 {dimension_numbers = #tpu.dot_dimension_numbers<[1], [0], [0], [1], [0, 0, 1, 1], [], []>} : vector<16x32xbf16>, vector<32x128xbf16>, vector<16x128xf32> -> vector<16x128xf32>
    %125 = vector.broadcast %121 : vector<1x128xf32> to vector<16x128xf32>
    %126 = arith.addf %124, %125 : vector<16x128xf32>
    %cst_38 = arith.constant 0.000000e+00 : f32
    %127 = vector.broadcast %cst_38 : f32 to vector<2x32xf32>
    %128 = vector.extract_strided_slice %126 {offsets = [0, 0], sizes = [2, 128], strides = [1, 1]} : vector<16x128xf32> to vector<2x128xf32>
    %129 = arith.truncf %127 : vector<2x32xf32> to vector<2x32xbf16>
    %cst_39 = arith.constant dense<0.000000e+00> : vector<2x128xf32>
    %130 = tpu.matmul %129, %118, %cst_39 {dimension_numbers = #tpu.dot_dimension_numbers<[1], [0], [0], [1], [0, 0, 1, 1], [], []>} : vector<2x32xbf16>, vector<32x128xbf16>, vector<2x128xf32> -> vector<2x128xf32>
    %131 = arith.addf %128, %130 : vector<2x128xf32>
    %132 = arith.negf %131 : vector<2x128xf32>
    %133 = math.exp %132 : vector<2x128xf32>
    %cst_40 = arith.constant 1.000000e+00 : f32
    %134 = vector.broadcast %cst_40 : f32 to vector<2x128xf32>
    %135 = arith.addf %134, %133 : vector<2x128xf32>
    %136 = arith.divf %134, %135 : vector<2x128xf32>
    %137 = vector.extract_strided_slice %136 {offsets = [0, 0], sizes = [2, 32], strides = [1, 1]} : vector<2x128xf32> to vector<2x32xf32>
    %138 = vector.extract_strided_slice %136 {offsets = [0, 32], sizes = [2, 32], strides = [1, 1]} : vector<2x128xf32> to vector<2x32xf32>
    %139 = vector.extract_strided_slice %136 {offsets = [0, 64], sizes = [2, 32], strides = [1, 1]} : vector<2x128xf32> to vector<2x32xf32>
    %cst_41 = arith.constant 2.000000e+00 : f32
    %140 = vector.broadcast %cst_41 : f32 to vector<2x32xf32>
    %141 = arith.mulf %140, %139 : vector<2x32xf32>
    %cst_42 = arith.constant 1.000000e+00 : f32
    %142 = vector.broadcast %cst_42 : f32 to vector<2x32xf32>
    %143 = arith.subf %141, %142 : vector<2x32xf32>
    %144 = vector.extract_strided_slice %136 {offsets = [0, 96], sizes = [2, 32], strides = [1, 1]} : vector<2x128xf32> to vector<2x32xf32>
    %145 = arith.mulf %138, %127 : vector<2x32xf32>
    %146 = arith.mulf %137, %143 : vector<2x32xf32>
    %147 = arith.addf %145, %146 : vector<2x32xf32>
    %148 = math.tanh %147 : vector<2x32xf32>
    %149 = arith.mulf %144, %148 : vector<2x32xf32>
    %150 = tpu.concatenate %149, %127 in 1 : vector<2x32xf32>, vector<2x32xf32> -> vector<2x64xf32>
    %151 = arith.truncf %150 : vector<2x64xf32> to vector<2x64xbf16>
    %cst_43 = arith.constant dense<0.000000e+00> : vector<2x128xf32>
    %152 = tpu.matmul %151, %120, %cst_43 {dimension_numbers = #tpu.dot_dimension_numbers<[1], [0], [0], [1], [0, 0, 1, 1], [], []>} : vector<2x64xbf16>, vector<64x128xbf16>, vector<2x128xf32> -> vector<2x128xf32>
    %153 = vector.broadcast %122 : vector<1x128xf32> to vector<2x128xf32>
    %154 = arith.addf %152, %153 : vector<2x128xf32>
    %155 = arith.negf %154 : vector<2x128xf32>
    %156 = math.exp %155 : vector<2x128xf32>
    %cst_44 = arith.constant 1.000000e+00 : f32
    %157 = vector.broadcast %cst_44 : f32 to vector<2x128xf32>
    %158 = arith.addf %157, %156 : vector<2x128xf32>
    %159 = arith.divf %157, %158 : vector<2x128xf32>
    %160 = vector.extract_strided_slice %159 {offsets = [0, 0], sizes = [2, 32], strides = [1, 1]} : vector<2x128xf32> to vector<2x32xf32>
    %161 = vector.extract_strided_slice %159 {offsets = [0, 32], sizes = [2, 32], strides = [1, 1]} : vector<2x128xf32> to vector<2x32xf32>
    %162 = vector.extract_strided_slice %159 {offsets = [0, 64], sizes = [2, 32], strides = [1, 1]} : vector<2x128xf32> to vector<2x32xf32>
    %cst_45 = arith.constant 2.000000e+00 : f32
    %163 = vector.broadcast %cst_45 : f32 to vector<2x32xf32>
    %164 = arith.mulf %163, %162 : vector<2x32xf32>
    %cst_46 = arith.constant 1.000000e+00 : f32
    %165 = vector.broadcast %cst_46 : f32 to vector<2x32xf32>
    %166 = arith.subf %164, %165 : vector<2x32xf32>
    %167 = vector.extract_strided_slice %159 {offsets = [0, 96], sizes = [2, 32], strides = [1, 1]} : vector<2x128xf32> to vector<2x32xf32>
    %168 = arith.mulf %161, %127 : vector<2x32xf32>
    %169 = arith.mulf %160, %166 : vector<2x32xf32>
    %170 = arith.addf %168, %169 : vector<2x32xf32>
    %171 = math.tanh %170 : vector<2x32xf32>
    %172 = arith.mulf %167, %171 : vector<2x32xf32>
    %173 = vector.extract_strided_slice %126 {offsets = [2, 0], sizes = [2, 128], strides = [1, 1]} : vector<16x128xf32> to vector<2x128xf32>
    %174 = arith.truncf %149 : vector<2x32xf32> to vector<2x32xbf16>
    %cst_47 = arith.constant dense<0.000000e+00> : vector<2x128xf32>
    %175 = tpu.matmul %174, %118, %cst_47 {dimension_numbers = #tpu.dot_dimension_numbers<[1], [0], [0], [1], [0, 0, 1, 1], [], []>} : vector<2x32xbf16>, vector<32x128xbf16>, vector<2x128xf32> -> vector<2x128xf32>
    %176 = arith.addf %173, %175 : vector<2x128xf32>
    %177 = arith.negf %176 : vector<2x128xf32>
    %178 = math.exp %177 : vector<2x128xf32>
    %cst_48 = arith.constant 1.000000e+00 : f32
    %179 = vector.broadcast %cst_48 : f32 to vector<2x128xf32>
    %180 = arith.addf %179, %178 : vector<2x128xf32>
    %181 = arith.divf %179, %180 : vector<2x128xf32>
    %182 = vector.extract_strided_slice %181 {offsets = [0, 0], sizes = [2, 32], strides = [1, 1]} : vector<2x128xf32> to vector<2x32xf32>
    %183 = vector.extract_strided_slice %181 {offsets = [0, 32], sizes = [2, 32], strides = [1, 1]} : vector<2x128xf32> to vector<2x32xf32>
    %184 = vector.extract_strided_slice %181 {offsets = [0, 64], sizes = [2, 32], strides = [1, 1]} : vector<2x128xf32> to vector<2x32xf32>
    %cst_49 = arith.constant 2.000000e+00 : f32
    %185 = vector.broadcast %cst_49 : f32 to vector<2x32xf32>
    %186 = arith.mulf %185, %184 : vector<2x32xf32>
    %cst_50 = arith.constant 1.000000e+00 : f32
    %187 = vector.broadcast %cst_50 : f32 to vector<2x32xf32>
    %188 = arith.subf %186, %187 : vector<2x32xf32>
    %189 = vector.extract_strided_slice %181 {offsets = [0, 96], sizes = [2, 32], strides = [1, 1]} : vector<2x128xf32> to vector<2x32xf32>
    %190 = arith.mulf %183, %147 : vector<2x32xf32>
    %191 = arith.mulf %182, %188 : vector<2x32xf32>
    %192 = arith.addf %190, %191 : vector<2x32xf32>
    %193 = math.tanh %192 : vector<2x32xf32>
    %194 = arith.mulf %189, %193 : vector<2x32xf32>
    %195 = tpu.concatenate %194, %172 in 1 : vector<2x32xf32>, vector<2x32xf32> -> vector<2x64xf32>
    %196 = arith.truncf %195 : vector<2x64xf32> to vector<2x64xbf16>
    %cst_51 = arith.constant dense<0.000000e+00> : vector<2x128xf32>
    %197 = tpu.matmul %196, %120, %cst_51 {dimension_numbers = #tpu.dot_dimension_numbers<[1], [0], [0], [1], [0, 0, 1, 1], [], []>} : vector<2x64xbf16>, vector<64x128xbf16>, vector<2x128xf32> -> vector<2x128xf32>
    %198 = vector.broadcast %122 : vector<1x128xf32> to vector<2x128xf32>
    %199 = arith.addf %197, %198 : vector<2x128xf32>
    %200 = arith.negf %199 : vector<2x128xf32>
    %201 = math.exp %200 : vector<2x128xf32>
    %cst_52 = arith.constant 1.000000e+00 : f32
    %202 = vector.broadcast %cst_52 : f32 to vector<2x128xf32>
    %203 = arith.addf %202, %201 : vector<2x128xf32>
    %204 = arith.divf %202, %203 : vector<2x128xf32>
    %205 = vector.extract_strided_slice %204 {offsets = [0, 0], sizes = [2, 32], strides = [1, 1]} : vector<2x128xf32> to vector<2x32xf32>
    %206 = vector.extract_strided_slice %204 {offsets = [0, 32], sizes = [2, 32], strides = [1, 1]} : vector<2x128xf32> to vector<2x32xf32>
    %207 = vector.extract_strided_slice %204 {offsets = [0, 64], sizes = [2, 32], strides = [1, 1]} : vector<2x128xf32> to vector<2x32xf32>
    %cst_53 = arith.constant 2.000000e+00 : f32
    %208 = vector.broadcast %cst_53 : f32 to vector<2x32xf32>
    %209 = arith.mulf %208, %207 : vector<2x32xf32>
    %cst_54 = arith.constant 1.000000e+00 : f32
    %210 = vector.broadcast %cst_54 : f32 to vector<2x32xf32>
    %211 = arith.subf %209, %210 : vector<2x32xf32>
    %212 = vector.extract_strided_slice %204 {offsets = [0, 96], sizes = [2, 32], strides = [1, 1]} : vector<2x128xf32> to vector<2x32xf32>
    %213 = arith.mulf %206, %170 : vector<2x32xf32>
    %214 = arith.mulf %205, %211 : vector<2x32xf32>
    %215 = arith.addf %213, %214 : vector<2x32xf32>
    %216 = math.tanh %215 : vector<2x32xf32>
    %217 = arith.mulf %212, %216 : vector<2x32xf32>
    %218 = vector.extract_strided_slice %126 {offsets = [4, 0], sizes = [2, 128], strides = [1, 1]} : vector<16x128xf32> to vector<2x128xf32>
    %219 = arith.truncf %194 : vector<2x32xf32> to vector<2x32xbf16>
    %cst_55 = arith.constant dense<0.000000e+00> : vector<2x128xf32>
    %220 = tpu.matmul %219, %118, %cst_55 {dimension_numbers = #tpu.dot_dimension_numbers<[1], [0], [0], [1], [0, 0, 1, 1], [], []>} : vector<2x32xbf16>, vector<32x128xbf16>, vector<2x128xf32> -> vector<2x128xf32>
    %221 = arith.addf %218, %220 : vector<2x128xf32>
    %222 = arith.negf %221 : vector<2x128xf32>
    %223 = math.exp %222 : vector<2x128xf32>
    %cst_56 = arith.constant 1.000000e+00 : f32
    %224 = vector.broadcast %cst_56 : f32 to vector<2x128xf32>
    %225 = arith.addf %224, %223 : vector<2x128xf32>
    %226 = arith.divf %224, %225 : vector<2x128xf32>
    %227 = vector.extract_strided_slice %226 {offsets = [0, 0], sizes = [2, 32], strides = [1, 1]} : vector<2x128xf32> to vector<2x32xf32>
    %228 = vector.extract_strided_slice %226 {offsets = [0, 32], sizes = [2, 32], strides = [1, 1]} : vector<2x128xf32> to vector<2x32xf32>
    %229 = vector.extract_strided_slice %226 {offsets = [0, 64], sizes = [2, 32], strides = [1, 1]} : vector<2x128xf32> to vector<2x32xf32>
    %cst_57 = arith.constant 2.000000e+00 : f32
    %230 = vector.broadcast %cst_57 : f32 to vector<2x32xf32>
    %231 = arith.mulf %230, %229 : vector<2x32xf32>
    %cst_58 = arith.constant 1.000000e+00 : f32
    %232 = vector.broadcast %cst_58 : f32 to vector<2x32xf32>
    %233 = arith.subf %231, %232 : vector<2x32xf32>
    %234 = vector.extract_strided_slice %226 {offsets = [0, 96], sizes = [2, 32], strides = [1, 1]} : vector<2x128xf32> to vector<2x32xf32>
    %235 = arith.mulf %228, %192 : vector<2x32xf32>
    %236 = arith.mulf %227, %233 : vector<2x32xf32>
    %237 = arith.addf %235, %236 : vector<2x32xf32>
    %238 = math.tanh %237 : vector<2x32xf32>
    %239 = arith.mulf %234, %238 : vector<2x32xf32>
    %240 = tpu.concatenate %239, %217 in 1 : vector<2x32xf32>, vector<2x32xf32> -> vector<2x64xf32>
    %241 = arith.truncf %240 : vector<2x64xf32> to vector<2x64xbf16>
    %cst_59 = arith.constant dense<0.000000e+00> : vector<2x128xf32>
    %242 = tpu.matmul %241, %120, %cst_59 {dimension_numbers = #tpu.dot_dimension_numbers<[1], [0], [0], [1], [0, 0, 1, 1], [], []>} : vector<2x64xbf16>, vector<64x128xbf16>, vector<2x128xf32> -> vector<2x128xf32>
    %243 = vector.broadcast %122 : vector<1x128xf32> to vector<2x128xf32>
    %244 = arith.addf %242, %243 : vector<2x128xf32>
    %245 = arith.negf %244 : vector<2x128xf32>
    %246 = math.exp %245 : vector<2x128xf32>
    %cst_60 = arith.constant 1.000000e+00 : f32
    %247 = vector.broadcast %cst_60 : f32 to vector<2x128xf32>
    %248 = arith.addf %247, %246 : vector<2x128xf32>
    %249 = arith.divf %247, %248 : vector<2x128xf32>
    %250 = vector.extract_strided_slice %249 {offsets = [0, 0], sizes = [2, 32], strides = [1, 1]} : vector<2x128xf32> to vector<2x32xf32>
    %251 = vector.extract_strided_slice %249 {offsets = [0, 32], sizes = [2, 32], strides = [1, 1]} : vector<2x128xf32> to vector<2x32xf32>
    %252 = vector.extract_strided_slice %249 {offsets = [0, 64], sizes = [2, 32], strides = [1, 1]} : vector<2x128xf32> to vector<2x32xf32>
    %cst_61 = arith.constant 2.000000e+00 : f32
    %253 = vector.broadcast %cst_61 : f32 to vector<2x32xf32>
    %254 = arith.mulf %253, %252 : vector<2x32xf32>
    %cst_62 = arith.constant 1.000000e+00 : f32
    %255 = vector.broadcast %cst_62 : f32 to vector<2x32xf32>
    %256 = arith.subf %254, %255 : vector<2x32xf32>
    %257 = vector.extract_strided_slice %249 {offsets = [0, 96], sizes = [2, 32], strides = [1, 1]} : vector<2x128xf32> to vector<2x32xf32>
    %258 = arith.mulf %251, %215 : vector<2x32xf32>
    %259 = arith.mulf %250, %256 : vector<2x32xf32>
    %260 = arith.addf %258, %259 : vector<2x32xf32>
    %261 = math.tanh %260 : vector<2x32xf32>
    %262 = arith.mulf %257, %261 : vector<2x32xf32>
    %263 = vector.extract_strided_slice %126 {offsets = [6, 0], sizes = [2, 128], strides = [1, 1]} : vector<16x128xf32> to vector<2x128xf32>
    %264 = arith.truncf %239 : vector<2x32xf32> to vector<2x32xbf16>
    %cst_63 = arith.constant dense<0.000000e+00> : vector<2x128xf32>
    %265 = tpu.matmul %264, %118, %cst_63 {dimension_numbers = #tpu.dot_dimension_numbers<[1], [0], [0], [1], [0, 0, 1, 1], [], []>} : vector<2x32xbf16>, vector<32x128xbf16>, vector<2x128xf32> -> vector<2x128xf32>
    %266 = arith.addf %263, %265 : vector<2x128xf32>
    %267 = arith.negf %266 : vector<2x128xf32>
    %268 = math.exp %267 : vector<2x128xf32>
    %cst_64 = arith.constant 1.000000e+00 : f32
    %269 = vector.broadcast %cst_64 : f32 to vector<2x128xf32>
    %270 = arith.addf %269, %268 : vector<2x128xf32>
    %271 = arith.divf %269, %270 : vector<2x128xf32>
    %272 = vector.extract_strided_slice %271 {offsets = [0, 0], sizes = [2, 32], strides = [1, 1]} : vector<2x128xf32> to vector<2x32xf32>
    %273 = vector.extract_strided_slice %271 {offsets = [0, 32], sizes = [2, 32], strides = [1, 1]} : vector<2x128xf32> to vector<2x32xf32>
    %274 = vector.extract_strided_slice %271 {offsets = [0, 64], sizes = [2, 32], strides = [1, 1]} : vector<2x128xf32> to vector<2x32xf32>
    %cst_65 = arith.constant 2.000000e+00 : f32
    %275 = vector.broadcast %cst_65 : f32 to vector<2x32xf32>
    %276 = arith.mulf %275, %274 : vector<2x32xf32>
    %cst_66 = arith.constant 1.000000e+00 : f32
    %277 = vector.broadcast %cst_66 : f32 to vector<2x32xf32>
    %278 = arith.subf %276, %277 : vector<2x32xf32>
    %279 = vector.extract_strided_slice %271 {offsets = [0, 96], sizes = [2, 32], strides = [1, 1]} : vector<2x128xf32> to vector<2x32xf32>
    %280 = arith.mulf %273, %237 : vector<2x32xf32>
    %281 = arith.mulf %272, %278 : vector<2x32xf32>
    %282 = arith.addf %280, %281 : vector<2x32xf32>
    %283 = math.tanh %282 : vector<2x32xf32>
    %284 = arith.mulf %279, %283 : vector<2x32xf32>
    %285 = tpu.concatenate %284, %262 in 1 : vector<2x32xf32>, vector<2x32xf32> -> vector<2x64xf32>
    %286 = arith.truncf %285 : vector<2x64xf32> to vector<2x64xbf16>
    %cst_67 = arith.constant dense<0.000000e+00> : vector<2x128xf32>
    %287 = tpu.matmul %286, %120, %cst_67 {dimension_numbers = #tpu.dot_dimension_numbers<[1], [0], [0], [1], [0, 0, 1, 1], [], []>} : vector<2x64xbf16>, vector<64x128xbf16>, vector<2x128xf32> -> vector<2x128xf32>
    %288 = vector.broadcast %122 : vector<1x128xf32> to vector<2x128xf32>
    %289 = arith.addf %287, %288 : vector<2x128xf32>
    %290 = arith.negf %289 : vector<2x128xf32>
    %291 = math.exp %290 : vector<2x128xf32>
    %cst_68 = arith.constant 1.000000e+00 : f32
    %292 = vector.broadcast %cst_68 : f32 to vector<2x128xf32>
    %293 = arith.addf %292, %291 : vector<2x128xf32>
    %294 = arith.divf %292, %293 : vector<2x128xf32>
    %295 = vector.extract_strided_slice %294 {offsets = [0, 0], sizes = [2, 32], strides = [1, 1]} : vector<2x128xf32> to vector<2x32xf32>
    %296 = vector.extract_strided_slice %294 {offsets = [0, 32], sizes = [2, 32], strides = [1, 1]} : vector<2x128xf32> to vector<2x32xf32>
    %297 = vector.extract_strided_slice %294 {offsets = [0, 64], sizes = [2, 32], strides = [1, 1]} : vector<2x128xf32> to vector<2x32xf32>
    %cst_69 = arith.constant 2.000000e+00 : f32
    %298 = vector.broadcast %cst_69 : f32 to vector<2x32xf32>
    %299 = arith.mulf %298, %297 : vector<2x32xf32>
    %cst_70 = arith.constant 1.000000e+00 : f32
    %300 = vector.broadcast %cst_70 : f32 to vector<2x32xf32>
    %301 = arith.subf %299, %300 : vector<2x32xf32>
    %302 = vector.extract_strided_slice %294 {offsets = [0, 96], sizes = [2, 32], strides = [1, 1]} : vector<2x128xf32> to vector<2x32xf32>
    %303 = arith.mulf %296, %260 : vector<2x32xf32>
    %304 = arith.mulf %295, %301 : vector<2x32xf32>
    %305 = arith.addf %303, %304 : vector<2x32xf32>
    %306 = math.tanh %305 : vector<2x32xf32>
    %307 = arith.mulf %302, %306 : vector<2x32xf32>
    %308 = vector.extract_strided_slice %126 {offsets = [8, 0], sizes = [2, 128], strides = [1, 1]} : vector<16x128xf32> to vector<2x128xf32>
    %309 = arith.truncf %284 : vector<2x32xf32> to vector<2x32xbf16>
    %cst_71 = arith.constant dense<0.000000e+00> : vector<2x128xf32>
    %310 = tpu.matmul %309, %118, %cst_71 {dimension_numbers = #tpu.dot_dimension_numbers<[1], [0], [0], [1], [0, 0, 1, 1], [], []>} : vector<2x32xbf16>, vector<32x128xbf16>, vector<2x128xf32> -> vector<2x128xf32>
    %311 = arith.addf %308, %310 : vector<2x128xf32>
    %312 = arith.negf %311 : vector<2x128xf32>
    %313 = math.exp %312 : vector<2x128xf32>
    %cst_72 = arith.constant 1.000000e+00 : f32
    %314 = vector.broadcast %cst_72 : f32 to vector<2x128xf32>
    %315 = arith.addf %314, %313 : vector<2x128xf32>
    %316 = arith.divf %314, %315 : vector<2x128xf32>
    %317 = vector.extract_strided_slice %316 {offsets = [0, 0], sizes = [2, 32], strides = [1, 1]} : vector<2x128xf32> to vector<2x32xf32>
    %318 = vector.extract_strided_slice %316 {offsets = [0, 32], sizes = [2, 32], strides = [1, 1]} : vector<2x128xf32> to vector<2x32xf32>
    %319 = vector.extract_strided_slice %316 {offsets = [0, 64], sizes = [2, 32], strides = [1, 1]} : vector<2x128xf32> to vector<2x32xf32>
    %cst_73 = arith.constant 2.000000e+00 : f32
    %320 = vector.broadcast %cst_73 : f32 to vector<2x32xf32>
    %321 = arith.mulf %320, %319 : vector<2x32xf32>
    %cst_74 = arith.constant 1.000000e+00 : f32
    %322 = vector.broadcast %cst_74 : f32 to vector<2x32xf32>
    %323 = arith.subf %321, %322 : vector<2x32xf32>
    %324 = vector.extract_strided_slice %316 {offsets = [0, 96], sizes = [2, 32], strides = [1, 1]} : vector<2x128xf32> to vector<2x32xf32>
    %325 = arith.mulf %318, %282 : vector<2x32xf32>
    %326 = arith.mulf %317, %323 : vector<2x32xf32>
    %327 = arith.addf %325, %326 : vector<2x32xf32>
    %328 = math.tanh %327 : vector<2x32xf32>
    %329 = arith.mulf %324, %328 : vector<2x32xf32>
    %330 = tpu.concatenate %329, %307 in 1 : vector<2x32xf32>, vector<2x32xf32> -> vector<2x64xf32>
    %331 = arith.truncf %330 : vector<2x64xf32> to vector<2x64xbf16>
    %cst_75 = arith.constant dense<0.000000e+00> : vector<2x128xf32>
    %332 = tpu.matmul %331, %120, %cst_75 {dimension_numbers = #tpu.dot_dimension_numbers<[1], [0], [0], [1], [0, 0, 1, 1], [], []>} : vector<2x64xbf16>, vector<64x128xbf16>, vector<2x128xf32> -> vector<2x128xf32>
    %333 = vector.broadcast %122 : vector<1x128xf32> to vector<2x128xf32>
    %334 = arith.addf %332, %333 : vector<2x128xf32>
    %335 = arith.negf %334 : vector<2x128xf32>
    %336 = math.exp %335 : vector<2x128xf32>
    %cst_76 = arith.constant 1.000000e+00 : f32
    %337 = vector.broadcast %cst_76 : f32 to vector<2x128xf32>
    %338 = arith.addf %337, %336 : vector<2x128xf32>
    %339 = arith.divf %337, %338 : vector<2x128xf32>
    %340 = vector.extract_strided_slice %339 {offsets = [0, 0], sizes = [2, 32], strides = [1, 1]} : vector<2x128xf32> to vector<2x32xf32>
    %341 = vector.extract_strided_slice %339 {offsets = [0, 32], sizes = [2, 32], strides = [1, 1]} : vector<2x128xf32> to vector<2x32xf32>
    %342 = vector.extract_strided_slice %339 {offsets = [0, 64], sizes = [2, 32], strides = [1, 1]} : vector<2x128xf32> to vector<2x32xf32>
    %cst_77 = arith.constant 2.000000e+00 : f32
    %343 = vector.broadcast %cst_77 : f32 to vector<2x32xf32>
    %344 = arith.mulf %343, %342 : vector<2x32xf32>
    %cst_78 = arith.constant 1.000000e+00 : f32
    %345 = vector.broadcast %cst_78 : f32 to vector<2x32xf32>
    %346 = arith.subf %344, %345 : vector<2x32xf32>
    %347 = vector.extract_strided_slice %339 {offsets = [0, 96], sizes = [2, 32], strides = [1, 1]} : vector<2x128xf32> to vector<2x32xf32>
    %348 = arith.mulf %341, %305 : vector<2x32xf32>
    %349 = arith.mulf %340, %346 : vector<2x32xf32>
    %350 = arith.addf %348, %349 : vector<2x32xf32>
    %351 = math.tanh %350 : vector<2x32xf32>
    %352 = arith.mulf %347, %351 : vector<2x32xf32>
    %353 = vector.extract_strided_slice %126 {offsets = [10, 0], sizes = [2, 128], strides = [1, 1]} : vector<16x128xf32> to vector<2x128xf32>
    %354 = arith.truncf %329 : vector<2x32xf32> to vector<2x32xbf16>
    %cst_79 = arith.constant dense<0.000000e+00> : vector<2x128xf32>
    %355 = tpu.matmul %354, %118, %cst_79 {dimension_numbers = #tpu.dot_dimension_numbers<[1], [0], [0], [1], [0, 0, 1, 1], [], []>} : vector<2x32xbf16>, vector<32x128xbf16>, vector<2x128xf32> -> vector<2x128xf32>
    %356 = arith.addf %353, %355 : vector<2x128xf32>
    %357 = arith.negf %356 : vector<2x128xf32>
    %358 = math.exp %357 : vector<2x128xf32>
    %cst_80 = arith.constant 1.000000e+00 : f32
    %359 = vector.broadcast %cst_80 : f32 to vector<2x128xf32>
    %360 = arith.addf %359, %358 : vector<2x128xf32>
    %361 = arith.divf %359, %360 : vector<2x128xf32>
    %362 = vector.extract_strided_slice %361 {offsets = [0, 0], sizes = [2, 32], strides = [1, 1]} : vector<2x128xf32> to vector<2x32xf32>
    %363 = vector.extract_strided_slice %361 {offsets = [0, 32], sizes = [2, 32], strides = [1, 1]} : vector<2x128xf32> to vector<2x32xf32>
    %364 = vector.extract_strided_slice %361 {offsets = [0, 64], sizes = [2, 32], strides = [1, 1]} : vector<2x128xf32> to vector<2x32xf32>
    %cst_81 = arith.constant 2.000000e+00 : f32
    %365 = vector.broadcast %cst_81 : f32 to vector<2x32xf32>
    %366 = arith.mulf %365, %364 : vector<2x32xf32>
    %cst_82 = arith.constant 1.000000e+00 : f32
    %367 = vector.broadcast %cst_82 : f32 to vector<2x32xf32>
    %368 = arith.subf %366, %367 : vector<2x32xf32>
    %369 = vector.extract_strided_slice %361 {offsets = [0, 96], sizes = [2, 32], strides = [1, 1]} : vector<2x128xf32> to vector<2x32xf32>
    %370 = arith.mulf %363, %327 : vector<2x32xf32>
    %371 = arith.mulf %362, %368 : vector<2x32xf32>
    %372 = arith.addf %370, %371 : vector<2x32xf32>
    %373 = math.tanh %372 : vector<2x32xf32>
    %374 = arith.mulf %369, %373 : vector<2x32xf32>
    %375 = tpu.concatenate %374, %352 in 1 : vector<2x32xf32>, vector<2x32xf32> -> vector<2x64xf32>
    %376 = arith.truncf %375 : vector<2x64xf32> to vector<2x64xbf16>
    %cst_83 = arith.constant dense<0.000000e+00> : vector<2x128xf32>
    %377 = tpu.matmul %376, %120, %cst_83 {dimension_numbers = #tpu.dot_dimension_numbers<[1], [0], [0], [1], [0, 0, 1, 1], [], []>} : vector<2x64xbf16>, vector<64x128xbf16>, vector<2x128xf32> -> vector<2x128xf32>
    %378 = vector.broadcast %122 : vector<1x128xf32> to vector<2x128xf32>
    %379 = arith.addf %377, %378 : vector<2x128xf32>
    %380 = arith.negf %379 : vector<2x128xf32>
    %381 = math.exp %380 : vector<2x128xf32>
    %cst_84 = arith.constant 1.000000e+00 : f32
    %382 = vector.broadcast %cst_84 : f32 to vector<2x128xf32>
    %383 = arith.addf %382, %381 : vector<2x128xf32>
    %384 = arith.divf %382, %383 : vector<2x128xf32>
    %385 = vector.extract_strided_slice %384 {offsets = [0, 0], sizes = [2, 32], strides = [1, 1]} : vector<2x128xf32> to vector<2x32xf32>
    %386 = vector.extract_strided_slice %384 {offsets = [0, 32], sizes = [2, 32], strides = [1, 1]} : vector<2x128xf32> to vector<2x32xf32>
    %387 = vector.extract_strided_slice %384 {offsets = [0, 64], sizes = [2, 32], strides = [1, 1]} : vector<2x128xf32> to vector<2x32xf32>
    %cst_85 = arith.constant 2.000000e+00 : f32
    %388 = vector.broadcast %cst_85 : f32 to vector<2x32xf32>
    %389 = arith.mulf %388, %387 : vector<2x32xf32>
    %cst_86 = arith.constant 1.000000e+00 : f32
    %390 = vector.broadcast %cst_86 : f32 to vector<2x32xf32>
    %391 = arith.subf %389, %390 : vector<2x32xf32>
    %392 = vector.extract_strided_slice %384 {offsets = [0, 96], sizes = [2, 32], strides = [1, 1]} : vector<2x128xf32> to vector<2x32xf32>
    %393 = arith.mulf %386, %350 : vector<2x32xf32>
    %394 = arith.mulf %385, %391 : vector<2x32xf32>
    %395 = arith.addf %393, %394 : vector<2x32xf32>
    %396 = math.tanh %395 : vector<2x32xf32>
    %397 = arith.mulf %392, %396 : vector<2x32xf32>
    %398 = vector.extract_strided_slice %126 {offsets = [12, 0], sizes = [2, 128], strides = [1, 1]} : vector<16x128xf32> to vector<2x128xf32>
    %399 = arith.truncf %374 : vector<2x32xf32> to vector<2x32xbf16>
    %cst_87 = arith.constant dense<0.000000e+00> : vector<2x128xf32>
    %400 = tpu.matmul %399, %118, %cst_87 {dimension_numbers = #tpu.dot_dimension_numbers<[1], [0], [0], [1], [0, 0, 1, 1], [], []>} : vector<2x32xbf16>, vector<32x128xbf16>, vector<2x128xf32> -> vector<2x128xf32>
    %401 = arith.addf %398, %400 : vector<2x128xf32>
    %402 = arith.negf %401 : vector<2x128xf32>
    %403 = math.exp %402 : vector<2x128xf32>
    %cst_88 = arith.constant 1.000000e+00 : f32
    %404 = vector.broadcast %cst_88 : f32 to vector<2x128xf32>
    %405 = arith.addf %404, %403 : vector<2x128xf32>
    %406 = arith.divf %404, %405 : vector<2x128xf32>
    %407 = vector.extract_strided_slice %406 {offsets = [0, 0], sizes = [2, 32], strides = [1, 1]} : vector<2x128xf32> to vector<2x32xf32>
    %408 = vector.extract_strided_slice %406 {offsets = [0, 32], sizes = [2, 32], strides = [1, 1]} : vector<2x128xf32> to vector<2x32xf32>
    %409 = vector.extract_strided_slice %406 {offsets = [0, 64], sizes = [2, 32], strides = [1, 1]} : vector<2x128xf32> to vector<2x32xf32>
    %cst_89 = arith.constant 2.000000e+00 : f32
    %410 = vector.broadcast %cst_89 : f32 to vector<2x32xf32>
    %411 = arith.mulf %410, %409 : vector<2x32xf32>
    %cst_90 = arith.constant 1.000000e+00 : f32
    %412 = vector.broadcast %cst_90 : f32 to vector<2x32xf32>
    %413 = arith.subf %411, %412 : vector<2x32xf32>
    %414 = vector.extract_strided_slice %406 {offsets = [0, 96], sizes = [2, 32], strides = [1, 1]} : vector<2x128xf32> to vector<2x32xf32>
    %415 = arith.mulf %408, %372 : vector<2x32xf32>
    %416 = arith.mulf %407, %413 : vector<2x32xf32>
    %417 = arith.addf %415, %416 : vector<2x32xf32>
    %418 = math.tanh %417 : vector<2x32xf32>
    %419 = arith.mulf %414, %418 : vector<2x32xf32>
    %420 = tpu.concatenate %419, %397 in 1 : vector<2x32xf32>, vector<2x32xf32> -> vector<2x64xf32>
    %421 = arith.truncf %420 : vector<2x64xf32> to vector<2x64xbf16>
    %cst_91 = arith.constant dense<0.000000e+00> : vector<2x128xf32>
    %422 = tpu.matmul %421, %120, %cst_91 {dimension_numbers = #tpu.dot_dimension_numbers<[1], [0], [0], [1], [0, 0, 1, 1], [], []>} : vector<2x64xbf16>, vector<64x128xbf16>, vector<2x128xf32> -> vector<2x128xf32>
    %423 = vector.broadcast %122 : vector<1x128xf32> to vector<2x128xf32>
    %424 = arith.addf %422, %423 : vector<2x128xf32>
    %425 = arith.negf %424 : vector<2x128xf32>
    %426 = math.exp %425 : vector<2x128xf32>
    %cst_92 = arith.constant 1.000000e+00 : f32
    %427 = vector.broadcast %cst_92 : f32 to vector<2x128xf32>
    %428 = arith.addf %427, %426 : vector<2x128xf32>
    %429 = arith.divf %427, %428 : vector<2x128xf32>
    %430 = vector.extract_strided_slice %429 {offsets = [0, 0], sizes = [2, 32], strides = [1, 1]} : vector<2x128xf32> to vector<2x32xf32>
    %431 = vector.extract_strided_slice %429 {offsets = [0, 32], sizes = [2, 32], strides = [1, 1]} : vector<2x128xf32> to vector<2x32xf32>
    %432 = vector.extract_strided_slice %429 {offsets = [0, 64], sizes = [2, 32], strides = [1, 1]} : vector<2x128xf32> to vector<2x32xf32>
    %cst_93 = arith.constant 2.000000e+00 : f32
    %433 = vector.broadcast %cst_93 : f32 to vector<2x32xf32>
    %434 = arith.mulf %433, %432 : vector<2x32xf32>
    %cst_94 = arith.constant 1.000000e+00 : f32
    %435 = vector.broadcast %cst_94 : f32 to vector<2x32xf32>
    %436 = arith.subf %434, %435 : vector<2x32xf32>
    %437 = vector.extract_strided_slice %429 {offsets = [0, 96], sizes = [2, 32], strides = [1, 1]} : vector<2x128xf32> to vector<2x32xf32>
    %438 = arith.mulf %431, %395 : vector<2x32xf32>
    %439 = arith.mulf %430, %436 : vector<2x32xf32>
    %440 = arith.addf %438, %439 : vector<2x32xf32>
    %441 = math.tanh %440 : vector<2x32xf32>
    %442 = arith.mulf %437, %441 : vector<2x32xf32>
    %443 = vector.extract_strided_slice %126 {offsets = [14, 0], sizes = [2, 128], strides = [1, 1]} : vector<16x128xf32> to vector<2x128xf32>
    %444 = arith.truncf %419 : vector<2x32xf32> to vector<2x32xbf16>
    %cst_95 = arith.constant dense<0.000000e+00> : vector<2x128xf32>
    %445 = tpu.matmul %444, %118, %cst_95 {dimension_numbers = #tpu.dot_dimension_numbers<[1], [0], [0], [1], [0, 0, 1, 1], [], []>} : vector<2x32xbf16>, vector<32x128xbf16>, vector<2x128xf32> -> vector<2x128xf32>
    %446 = arith.addf %443, %445 : vector<2x128xf32>
    %447 = arith.negf %446 : vector<2x128xf32>
    %448 = math.exp %447 : vector<2x128xf32>
    %cst_96 = arith.constant 1.000000e+00 : f32
    %449 = vector.broadcast %cst_96 : f32 to vector<2x128xf32>
    %450 = arith.addf %449, %448 : vector<2x128xf32>
    %451 = arith.divf %449, %450 : vector<2x128xf32>
    %452 = vector.extract_strided_slice %451 {offsets = [0, 0], sizes = [2, 32], strides = [1, 1]} : vector<2x128xf32> to vector<2x32xf32>
    %453 = vector.extract_strided_slice %451 {offsets = [0, 32], sizes = [2, 32], strides = [1, 1]} : vector<2x128xf32> to vector<2x32xf32>
    %454 = vector.extract_strided_slice %451 {offsets = [0, 64], sizes = [2, 32], strides = [1, 1]} : vector<2x128xf32> to vector<2x32xf32>
    %cst_97 = arith.constant 2.000000e+00 : f32
    %455 = vector.broadcast %cst_97 : f32 to vector<2x32xf32>
    %456 = arith.mulf %455, %454 : vector<2x32xf32>
    %cst_98 = arith.constant 1.000000e+00 : f32
    %457 = vector.broadcast %cst_98 : f32 to vector<2x32xf32>
    %458 = arith.subf %456, %457 : vector<2x32xf32>
    %459 = vector.extract_strided_slice %451 {offsets = [0, 96], sizes = [2, 32], strides = [1, 1]} : vector<2x128xf32> to vector<2x32xf32>
    %460 = arith.mulf %453, %417 : vector<2x32xf32>
    %461 = arith.mulf %452, %458 : vector<2x32xf32>
    %462 = arith.addf %460, %461 : vector<2x32xf32>
    %463 = math.tanh %462 : vector<2x32xf32>
    %464 = arith.mulf %459, %463 : vector<2x32xf32>
    %465 = tpu.concatenate %464, %442 in 1 : vector<2x32xf32>, vector<2x32xf32> -> vector<2x64xf32>
    %466 = arith.truncf %465 : vector<2x64xf32> to vector<2x64xbf16>
    %cst_99 = arith.constant dense<0.000000e+00> : vector<2x128xf32>
    %467 = tpu.matmul %466, %120, %cst_99 {dimension_numbers = #tpu.dot_dimension_numbers<[1], [0], [0], [1], [0, 0, 1, 1], [], []>} : vector<2x64xbf16>, vector<64x128xbf16>, vector<2x128xf32> -> vector<2x128xf32>
    %468 = vector.broadcast %122 : vector<1x128xf32> to vector<2x128xf32>
    %469 = arith.addf %467, %468 : vector<2x128xf32>
    %470 = arith.negf %469 : vector<2x128xf32>
    %471 = math.exp %470 : vector<2x128xf32>
    %cst_100 = arith.constant 1.000000e+00 : f32
    %472 = vector.broadcast %cst_100 : f32 to vector<2x128xf32>
    %473 = arith.addf %472, %471 : vector<2x128xf32>
    %474 = arith.divf %472, %473 : vector<2x128xf32>
    %475 = vector.extract_strided_slice %474 {offsets = [0, 0], sizes = [2, 32], strides = [1, 1]} : vector<2x128xf32> to vector<2x32xf32>
    %476 = vector.extract_strided_slice %474 {offsets = [0, 32], sizes = [2, 32], strides = [1, 1]} : vector<2x128xf32> to vector<2x32xf32>
    %477 = vector.extract_strided_slice %474 {offsets = [0, 64], sizes = [2, 32], strides = [1, 1]} : vector<2x128xf32> to vector<2x32xf32>
    %cst_101 = arith.constant 2.000000e+00 : f32
    %478 = vector.broadcast %cst_101 : f32 to vector<2x32xf32>
    %479 = arith.mulf %478, %477 : vector<2x32xf32>
    %cst_102 = arith.constant 1.000000e+00 : f32
    %480 = vector.broadcast %cst_102 : f32 to vector<2x32xf32>
    %481 = arith.subf %479, %480 : vector<2x32xf32>
    %482 = vector.extract_strided_slice %474 {offsets = [0, 96], sizes = [2, 32], strides = [1, 1]} : vector<2x128xf32> to vector<2x32xf32>
    %483 = arith.mulf %476, %440 : vector<2x32xf32>
    %484 = arith.mulf %475, %481 : vector<2x32xf32>
    %485 = arith.addf %483, %484 : vector<2x32xf32>
    %486 = math.tanh %485 : vector<2x32xf32>
    %487 = arith.mulf %482, %486 : vector<2x32xf32>
    %488 = tpu.concatenate %172, %217, %262, %307, %352, %397, %442, %487 in 0 : vector<2x32xf32>, vector<2x32xf32>, vector<2x32xf32>, vector<2x32xf32>, vector<2x32xf32>, vector<2x32xf32>, vector<2x32xf32>, vector<2x32xf32> -> vector<16x32xf32>
    %489 = vector.extract_strided_slice %1 {offsets = [9, 0], sizes = [1, 32], strides = [1, 1]} : vector<13x32xf32> to vector<1x32xf32>
    %490 = vector.broadcast %489 : vector<1x32xf32> to vector<16x32xf32>
    %491 = arith.mulf %488, %490 : vector<16x32xf32>
    %cst_103 = arith.constant dense<0.000000e+00> : vector<16xf32>
    %492 = vector.multi_reduction <add>, %491, %cst_103 [1] : vector<16x32xf32> to vector<16xf32>
    %493 = vector.shape_cast %492 : vector<16xf32> to vector<16x1xf32>
    %c0_104 = arith.constant 0 : index
    %494 = memref.load %arg5[%c0_104] : memref<1xf32, #tpu.memory_space<smem>>
    %495 = vector.broadcast %494 : f32 to vector<16x1xf32>
    %496 = arith.addf %493, %495 : vector<16x1xf32>
    %497 = arith.negf %496 : vector<16x1xf32>
    %498 = math.exp %497 : vector<16x1xf32>
    %cst_105 = arith.constant 1.000000e+00 : f32
    %499 = vector.broadcast %cst_105 : f32 to vector<16x1xf32>
    %500 = arith.addf %499, %498 : vector<16x1xf32>
    %501 = arith.divf %499, %500 : vector<16x1xf32>
    %c0_106 = arith.constant 0 : index
    %c0_107 = arith.constant 0 : index
    %502 = vector.load %arg6[%c0_106, %c0_107] : memref<16x1xf32, #tpu.memory_space<vmem>>, vector<16x1xf32>
    tpu.vector_store %arg6[%c0_106, %c0_107], %501 {strides = array<i32>} : memref<16x1xf32, #tpu.memory_space<vmem>>, vector<16x1xf32>,
    return
  }
}

</mosaic_0001>

<llo_original>
// kernel: tpu_custom_call.1
$region0: #{tpu_custom_call.1}
  #allocation0 [shape = 'u32[]', space=smem, size = 0x4, offset = 0x4, fixed_abs, tag = 'smem constant byte address 0x4 - core index']
  #allocation1 [shape = 'u32[144,128]{1,0:T(1,128)}', space=vmem, size = 0x12000, scoped, tag = 'internal scratch']
  #allocation2 [shape = 'f32[1]{0:T(128)S(6)}', space=smem, size = 0x200, scoped, tag = 'scoped memory for tpu_custom_call.1']
  %s0 = inlined_call_operand.hbm [shape: f32[16,43], index: 0, kind: input, shape index: {}]
  %s1 = inlined_call_operand.vmem [shape: bf16[104,32], index: 1, kind: input, shape index: {}]
  %s2 = inlined_call_operand.vmem [shape: bf16[2,64,128], index: 2, kind: input, shape index: {}]
  %s3 = inlined_call_operand.vmem [shape: f32[13,32], index: 3, kind: input, shape index: {}]
  %s4 = inlined_call_operand.vmem [shape: f32[2,128], index: 4, kind: input, shape index: {}]
  %s5 = inlined_call_operand.<no memory space> [shape: f32[1], index: 5, kind: input, shape index: {}]
  %s6 = inlined_call_operand.vmem [shape: f32[16,1], index: 6, kind: output, shape index: {}]
  %s7 = sld [smem:[#allocation0]]
  $region38: #{tpu_custom_call.1} parent=0
    _
  %s9 = ssub.s32 1, %s7
  %s10 = scalar_select 0, %s9, %s7
  %11 = sst [smem:[#allocation2]] %s5
  $region1: #{tpu_custom_call.1} parent=0
    #allocation3 [shape = 'u8[8192]{0}', space=vmem, size = 0x2000, scoped, tag = 'input window, operand 0, single buffered']
    #allocation4 [shape = 's32[1]{0}', space=sflag, size = 0x4, scoped, tag = 'scoped memory for tpu_custom_call.1']
    %12 = vsyncpa [#allocation4], 0
    // Predicated region
    $region2: #{tpu_custom_call.1} parent=1 // pred_check
      _
    $region3: #{tpu_custom_call.1} parent=1 // pred_check_branch
      %14 = sbr.rel (0) target = $region5
    $region4: #{tpu_custom_call.1} parent=1 // pred_region
      %s16 = ssub.s32 256, 256
      %17 = vsyncadd [#allocation4], %s16
      %s18 = sshll.u32 [#allocation3], 4
      %s19 = int_to_ptr.vmem [resolvable:$true] %s18
      %24 = dma.hbm_to_vmem [thread:$0]  %s0, 256, %s19, [#allocation4], 128, 128, 8
    $region5: #{tpu_custom_call.1} parent=1 // pred_fallthru
      _
    // Predicated region
    $region6: #{tpu_custom_call.1} parent=1 // pred_check
      _
    $region7: #{tpu_custom_call.1} parent=1 // pred_check_branch
      %26 = sbr.rel (0) target = $region9
    $region8: #{tpu_custom_call.1} parent=1 // pred_region
      _
    $region9: #{tpu_custom_call.1} parent=1 // pred_fallthru
      _
    // Predicated region
    $region10: #{tpu_custom_call.1} parent=1 // pred_check
      _
    $region11: #{tpu_custom_call.1} parent=1 // pred_check_branch
      %28 = sbr.rel (0) target = $region13
    $region12: #{tpu_custom_call.1} parent=1 // pred_region
      _
    $region13: #{tpu_custom_call.1} parent=1 // pred_fallthru
      _
    // Predicated region
    $region14: #{tpu_custom_call.1} parent=1 // pred_check
      _
    $region15: #{tpu_custom_call.1} parent=1 // pred_check_branch
      %30 = sbr.rel (0) target = $region17
    $region16: #{tpu_custom_call.1} parent=1 // pred_region
      _
    $region17: #{tpu_custom_call.1} parent=1 // pred_fallthru
      _
    // Predicated region
    $region18: #{tpu_custom_call.1} parent=1 // pred_check
      _
    $region19: #{tpu_custom_call.1} parent=1 // pred_check_branch
      %32 = sbr.rel (0) target = $region21
    $region20: #{tpu_custom_call.1} parent=1 // pred_region
      _
    $region21: #{tpu_custom_call.1} parent=1 // pred_fallthru
      _
    // Predicated region
    $region22: #{tpu_custom_call.1} parent=1 // pred_check
      _
    $region23: #{tpu_custom_call.1} parent=1 // pred_check_branch
      %34 = sbr.rel (0) target = $region25
    $region24: #{tpu_custom_call.1} parent=1 // pred_region
      _
    $region25: #{tpu_custom_call.1} parent=1 // pred_fallthru
      _
    // Predicated region
    $region26: #{tpu_custom_call.1} parent=1 // pred_check
      _
    $region27: #{tpu_custom_call.1} parent=1 // pred_check_branch
      %36 = sbr.rel (0) target = $region29
    $region28: #{tpu_custom_call.1} parent=1 // pred_region
      %37 = dma.done [#allocation4], 256
    $region29: #{tpu_custom_call.1} parent=1 // pred_fallthru
      _
    %v39 = vld [vmem:[#allocation3] sm:$0xff]
    %v40 = vld [vmem:[#allocation3 + $0x8] sm:$0xff]
    %v41 = vld [vmem:[%s3] sm:$0xff]
    %v42 = vld [vmem:[%s3 + $0x8] sm:$0x1f]
    %v43 = vpack.c.bf16 %v40, %v39
    %v44 = vld [vmem:[%s1] sm:$0xf]
    %v45 = vld [vmem:[%s1 + $0x4] sm:$0xf]
    %v46 = vld [vmem:[%s1 + $0x8] sm:$0xf]
    %v47 = vld [vmem:[%s1 + $0xc] sm:$0xf]
    %v48 = vld [vmem:[%s1 + $0x10] sm:$0xf]
    %v49 = vlaneseq
    %v50 = vshrl.u32 %v49, 7
    %v51 = vsub.s32 0, %v50
    %v52 = vrot.slane %v41, %v51
    %v58 = vunpack.c.l.b16 %v44
    %v59 = vunpack.c.l.b16 %v45
    %v60 = vunpack.c.l.b16 %v46
    %v61 = vunpack.c.l.b16 %v47
    %v62 = vunpack.c.l.b16 %v48
    %v63 = vpack.c.b16 %v59, %v58
    %v64 = vpack.c.b16 %v61, %v60
    %v65 = vpack.c.b16 %v62, %v62
    %vm68 = vcmask 326656
    %v70 = vsel %vm68, %v43, 0
    %vm72 = vcmask 1043456
    %v74 = vsel %vm72, %v65, 0
    %76 = vmatprep.subr.bf16.mxu0 0
    %77 = vmatpush1.bf16.msra.mxu0 %v63
    %78 = vmatprep.subr.bf16.mxu0 0
    %79 = vmatpush1.bf16.msra.mxu0 %v64
    %80 = vmatprep.subr.bf16.mxu0 0
    %81 = vmatpush1.bf16.msra.mxu0 %v74
    %82 = vmatprep.subr.bf16.mxu0 0
    %83 = vmatpush1.bf16.msra.mxu0 0
    %84 = vmatprep.subr.bf16.mxu0 0
    %85 = vmatpush1.bf16.msra.mxu0 0
    %86 = vmatprep.subr.bf16.mxu0 0
    %87 = vmatpush1.bf16.msra.mxu0 0
    %88 = vmatprep.subr.bf16.mxu0 0
    %89 = vmatpush1.bf16.msra.mxu0 0
    %90 = vmatprep.subr.bf16.mxu0 0
    %91 = vmatpush1.bf16.msra.mxu0 0
    %92 = vmatprep.subr.bf16.mxu0 0
    %93 = vmatpush1.bf16.msra.mxu0 0
    %94 = vmatprep.subr.bf16.mxu0 0
    %95 = vmatpush1.bf16.msra.mxu0 0
    %96 = vmatprep.subr.bf16.mxu0 0
    %97 = vmatpush1.bf16.msra.mxu0 0
    %98 = vmatprep.subr.bf16.mxu0 0
    %99 = vmatpush1.bf16.msra.mxu0 0
    %100 = vmatprep.subr.bf16.mxu0 0
    %101 = vmatpush1.bf16.msra.mxu0 0
    %102 = vmatprep.subr.bf16.mxu0 0
    %103 = vmatpush1.bf16.msra.mxu0 0
    %104 = vmatprep.subr.bf16.mxu0 0
    %105 = vmatpush1.bf16.msra.mxu0 0
    %106 = vmatprep.subr.bf16.mxu0 0
    %107 = vmatpush1.bf16.msra.mxu0 0
    %108 = vmatprep.mubr.bf16.mxu0 0
    %109 = vmatmul.mubr.bf16.gmra.mrb[0].mxu0 %v70
    %v110 = vpop.f32.mrb[0].mxu0
    %v111 = vadd.f32 %v52, %v110
    %v112 = vpop.f32.mrb[0].mxu0
    %v113 = vpop.f32.mrb[0].mxu0
    %v114 = vadd.f32 %v52, %v113
    %v115 = vpop.f32.mrb[0].mxu0
    %116 = vdwg.mxu0
    %vm117 = vcmask 261120
    %v118 = vsel %vm117, %v111, 0.0
    %119 = vadd.xlane.f32.xlu0 %v118
    %v120 = vpop.xlane.xlu0 %119
    %v121 = vsel %vm117, %v114, 0.0
    %122 = vadd.xlane.f32.xlu0 %v121
    %v123 = vpop.xlane.xlu0 %122
    %v124 = vrcp.pop 32.0
    %v125 = vmul.f32 %v120, %v124
    %v126 = vmul.f32 %v123, %v124
    %v127 = vsub.f32 %v111, %v125
    %v128 = vsub.f32 %v114, %v126
    %v129 = vmul.f32 %v127, %v127
    %v130 = vmul.f32 %v128, %v128
    %v131 = vsel %vm117, %v129, 0.0
    %132 = vadd.xlane.f32.xlu0 %v131
    %v133 = vpop.xlane.xlu0 %132
    %v134 = vsel %vm117, %v130, 0.0
    %135 = vadd.xlane.f32.xlu0 %v134
    %v136 = vpop.xlane.xlu0 %135
    %v137 = vmul.f32 %v133, %v124
    %v138 = vmul.f32 %v136, %v124
    %v139 = vadd.f32 %v137, 1e-05
    %v140 = vadd.f32 %v138, 1e-05
    %v141 = vrsqrt.pop %v139
    %v142 = vrsqrt.pop %v140
    %v143 = vmul.f32 %v127, %v141
    %v144 = vmul.f32 %v128, %v142
    %v145 = vlaneseq
    %v146 = vshrl.u32 %v145, 7
    %v147 = vsub.s32 1, %v146
    %v148 = vrot.slane %v41, %v147
    %v149 = vmul.f32 %v143, %v148
    %v150 = vmul.f32 %v144, %v148
    %v151 = vlaneseq
    %v152 = vshrl.u32 %v151, 7
    %v153 = vsub.s32 2, %v152
    %v154 = vrot.slane %v41, %v153
    %v155 = vadd.f32 %v149, %v154
    %v156 = vadd.f32 %v150, %v154
    %158 = vset.pattern.permute.xlu0 40
    %159 = vperm.xlu0 %158, %v39
    %v160 = vpop.permute.xlu0 %159
    %163 = vset.pattern.permute.xlu0 40
    %164 = vperm.xlu0 %163, %v40
    %v165 = vpop.permute.xlu0 %164
    %v167 = vlaneseq
    %v168 = vshrl.u32 %v167, 7
    %v169 = vsub.s32 2, %v168
    %v170 = vrot.slane %v42, %v169
    %v171 = vmul.f32 %v160, %v170
    %v172 = vmul.f32 %v165, %v170
    %v173 = vlaneseq
    %v174 = vshrl.u32 %v173, 7
    %v175 = vsub.s32 3, %v174
    %v176 = vrot.slane %v41, %v175
    %v177 = vadd.f32 %v176, %v171
    %v178 = vadd.f32 %v176, %v172
    %179 = vset.pattern.permute.xlu0 41
    %180 = vperm.xlu0 %179, %v39
    %v181 = vpop.permute.xlu0 %180
    %183 = vset.pattern.permute.xlu0 41
    %184 = vperm.xlu0 %183, %v40
    %v185 = vpop.permute.xlu0 %184
    %v187 = vlaneseq
    %v188 = vshrl.u32 %v187, 7
    %v189 = vsub.s32 3, %v188
    %v190 = vrot.slane %v42, %v189
    %v191 = vmul.f32 %v181, %v190
    %v192 = vmul.f32 %v185, %v190
    %v193 = vadd.f32 %v177, %v191
    %v194 = vadd.f32 %v178, %v192
    %195 = vset.pattern.permute.xlu0 42
    %196 = vperm.xlu0 %195, %v39
    %v197 = vpop.permute.xlu0 %196
    %199 = vset.pattern.permute.xlu0 42
    %200 = vperm.xlu0 %199, %v40
    %v201 = vpop.permute.xlu0 %200
    %v203 = vlaneseq
    %v204 = vshrl.u32 %v203, 7
    %v205 = vsub.s32 4, %v204
    %v206 = vrot.slane %v42, %v205
    %v207 = vmul.f32 %v197, %v206
    %v208 = vmul.f32 %v201, %v206
    %v209 = vadd.f32 %v193, %v207
    %v210 = vadd.f32 %v194, %v208
    %v211 = vsel %vm117, %v209, 0.0
    %212 = vadd.xlane.f32.xlu0 %v211
    %v213 = vpop.xlane.xlu0 %212
    %v214 = vsel %vm117, %v210, 0.0
    %215 = vadd.xlane.f32.xlu0 %v214
    %v216 = vpop.xlane.xlu0 %215
    %v217 = vmul.f32 %v213, %v124
    %v218 = vmul.f32 %v216, %v124
    %v219 = vsub.f32 %v209, %v217
    %v220 = vsub.f32 %v210, %v218
    %v221 = vmul.f32 %v219, %v219
    %v222 = vmul.f32 %v220, %v220
    %v223 = vsel %vm117, %v221, 0.0
    %224 = vadd.xlane.f32.xlu0 %v223
    %v225 = vpop.xlane.xlu0 %224
    %v226 = vsel %vm117, %v222, 0.0
    %227 = vadd.xlane.f32.xlu0 %v226
    %v228 = vpop.xlane.xlu0 %227
    %v229 = vmul.f32 %v225, %v124
    %v230 = vmul.f32 %v228, %v124
    %v231 = vadd.f32 %v229, 1e-05
    %v232 = vadd.f32 %v230, 1e-05
    %v233 = vrsqrt.pop %v231
    %v234 = vrsqrt.pop %v232
    %v235 = vmul.f32 %v219, %v233
    %v236 = vmul.f32 %v220, %v234
    %v237 = vlaneseq
    %v238 = vshrl.u32 %v237, 7
    %v239 = vsub.s32 4, %v238
    %v240 = vrot.slane %v41, %v239
    %v241 = vmul.f32 %v235, %v240
    %v242 = vmul.f32 %v236, %v240
    %v243 = vlaneseq
    %v244 = vshrl.u32 %v243, 7
    %v245 = vsub.s32 5, %v244
    %v246 = vrot.slane %v41, %v245
    %v247 = vadd.f32 %v241, %v246
    %v248 = vadd.f32 %v242, %v246
    %v249 = vmax.f32 %v155, 0.0
    %v250 = vmax.f32 %v156, 0.0
    %v251 = vpack.c.bf16 %v250, %v249
    %v252 = vld [vmem:[%s1 + $0x14] sm:$0xf]
    %v253 = vld [vmem:[%s1 + $0x18] sm:$0xf]
    %v254 = vld [vmem:[%s1 + $0x1c] sm:$0xf]
    %v255 = vld [vmem:[%s1 + $0x20] sm:$0xf]
    %v256 = vmax.f32 %v247, 0.0
    %v257 = vmax.f32 %v248, 0.0
    %v258 = vpack.c.bf16 %v257, %v256
    %v259 = vld [vmem:[%s1 + $0x24] sm:$0xf]
    %v260 = vld [vmem:[%s1 + $0x28] sm:$0xf]
    %v261 = vld [vmem:[%s1 + $0x2c] sm:$0xf]
    %v262 = vld [vmem:[%s1 + $0x30] sm:$0xf]
    %v267 = vunpack.c.l.b16 %v259
    %v268 = vunpack.c.l.b16 %v260
    %v269 = vunpack.c.l.b16 %v261
    %v270 = vunpack.c.l.b16 %v262
    %v271 = vpack.c.b16 %v268, %v267
    %v272 = vpack.c.b16 %v270, %v269
    %v276 = vsel %vm117, %v258, 0
    %278 = vmatprep.subr.bf16.mxu0 0
    %279 = vmatpush1.bf16.msra.mxu0 %v271
    %280 = vmatprep.subr.bf16.mxu0 0
    %281 = vmatpush1.bf16.msra.mxu0 %v272
    %282 = vmatprep.subr.bf16.mxu0 0
    %283 = vmatpush1.bf16.msra.mxu0 0
    %284 = vmatprep.subr.bf16.mxu0 0
    %285 = vmatpush1.bf16.msra.mxu0 0
    %286 = vmatprep.subr.bf16.mxu0 0
    %287 = vmatpush1.bf16.msra.mxu0 0
    %288 = vmatprep.subr.bf16.mxu0 0
    %289 = vmatpush1.bf16.msra.mxu0 0
    %290 = vmatprep.subr.bf16.mxu0 0
    %291 = vmatpush1.bf16.msra.mxu0 0
    %292 = vmatprep.subr.bf16.mxu0 0
    %293 = vmatpush1.bf16.msra.mxu0 0
    %294 = vmatprep.subr.bf16.mxu0 0
    %295 = vmatpush1.bf16.msra.mxu0 0
    %296 = vmatprep.subr.bf16.mxu0 0
    %297 = vmatpush1.bf16.msra.mxu0 0
    %298 = vmatprep.subr.bf16.mxu0 0
    %299 = vmatpush1.bf16.msra.mxu0 0
    %300 = vmatprep.subr.bf16.mxu0 0
    %301 = vmatpush1.bf16.msra.mxu0 0
    %302 = vmatprep.subr.bf16.mxu0 0
    %303 = vmatpush1.bf16.msra.mxu0 0
    %304 = vmatprep.subr.bf16.mxu0 0
    %305 = vmatpush1.bf16.msra.mxu0 0
    %306 = vmatprep.subr.bf16.mxu0 0
    %307 = vmatpush1.bf16.msra.mxu0 0
    %308 = vmatprep.subr.bf16.mxu0 0
    %309 = vmatpush1.bf16.msra.mxu0 0
    %310 = vmatprep.mubr.bf16.mxu0 0
    %311 = vmatmul.mubr.bf16.gmra.mrb[0].mxu0 %v276
    %v312 = vpop.f32.mrb[0].mxu0
    %v313 = vadd.f32 0.0, %v312
    %v314 = vpop.f32.mrb[0].mxu0
    %v315 = vpop.f32.mrb[0].mxu0
    %v316 = vadd.f32 0.0, %v315
    %v317 = vpop.f32.mrb[0].mxu0
    %318 = vdwg.mxu0
    %v323 = vunpack.c.l.b16 %v252
    %v324 = vunpack.c.l.b16 %v253
    %v325 = vunpack.c.l.b16 %v254
    %v326 = vunpack.c.l.b16 %v255
    %v327 = vpack.c.b16 %v324, %v323
    %v328 = vpack.c.b16 %v326, %v325
    %v332 = vsel %vm117, %v251, 0
    %334 = vmatprep.subr.bf16.mxu0 0
    %335 = vmatpush1.bf16.msra.mxu0 %v327
    %336 = vmatprep.subr.bf16.mxu0 0
    %337 = vmatpush1.bf16.msra.mxu0 %v328
    %338 = vmatprep.subr.bf16.mxu0 0
    %339 = vmatpush1.bf16.msra.mxu0 0
    %340 = vmatprep.subr.bf16.mxu0 0
    %341 = vmatpush1.bf16.msra.mxu0 0
    %342 = vmatprep.subr.bf16.mxu0 0
    %343 = vmatpush1.bf16.msra.mxu0 0
    %344 = vmatprep.subr.bf16.mxu0 0
    %345 = vmatpush1.bf16.msra.mxu0 0
    %346 = vmatprep.subr.bf16.mxu0 0
    %347 = vmatpush1.bf16.msra.mxu0 0
    %348 = vmatprep.subr.bf16.mxu0 0
    %349 = vmatpush1.bf16.msra.mxu0 0
    %350 = vmatprep.subr.bf16.mxu0 0
    %351 = vmatpush1.bf16.msra.mxu0 0
    %352 = vmatprep.subr.bf16.mxu0 0
    %353 = vmatpush1.bf16.msra.mxu0 0
    %354 = vmatprep.subr.bf16.mxu0 0
    %355 = vmatpush1.bf16.msra.mxu0 0
    %356 = vmatprep.subr.bf16.mxu0 0
    %357 = vmatpush1.bf16.msra.mxu0 0
    %358 = vmatprep.subr.bf16.mxu0 0
    %359 = vmatpush1.bf16.msra.mxu0 0
    %360 = vmatprep.subr.bf16.mxu0 0
    %361 = vmatpush1.bf16.msra.mxu0 0
    %362 = vmatprep.subr.bf16.mxu0 0
    %363 = vmatpush1.bf16.msra.mxu0 0
    %364 = vmatprep.subr.bf16.mxu0 0
    %365 = vmatpush1.bf16.msra.mxu0 0
    %366 = vmatprep.mubr.bf16.mxu0 0
    %367 = vmatmul.mubr.bf16.gmra.mrb[0].mxu0 %v332
    %v368 = vpop.f32.mrb[0].mxu0
    %v369 = vadd.f32 %v313, %v368
    %v370 = vpop.f32.mrb[0].mxu0
    %v371 = vpop.f32.mrb[0].mxu0
    %v372 = vadd.f32 %v316, %v371
    %v373 = vpop.f32.mrb[0].mxu0
    %374 = vdwg.mxu0
    %v375 = vlaneseq
    %v376 = vshrl.u32 %v375, 7
    %v377 = vsub.s32 6, %v376
    %v378 = vrot.slane %v41, %v377
    %v379 = vadd.f32 %v369, %v378
    %v380 = vadd.f32 %v372, %v378
    %v381 = vsel %vm117, %v379, 0.0
    %382 = vadd.xlane.f32.xlu0 %v381
    %v383 = vpop.xlane.xlu0 %382
    %v384 = vsel %vm117, %v380, 0.0
    %385 = vadd.xlane.f32.xlu0 %v384
    %v386 = vpop.xlane.xlu0 %385
    %v387 = vmul.f32 %v383, %v124
    %v388 = vmul.f32 %v386, %v124
    %v389 = vsub.f32 %v379, %v387
    %v390 = vsub.f32 %v380, %v388
    %v391 = vmul.f32 %v389, %v389
    %v392 = vmul.f32 %v390, %v390
    %v393 = vsel %vm117, %v391, 0.0
    %394 = vadd.xlane.f32.xlu0 %v393
    %v395 = vpop.xlane.xlu0 %394
    %v396 = vsel %vm117, %v392, 0.0
    %397 = vadd.xlane.f32.xlu0 %v396
    %v398 = vpop.xlane.xlu0 %397
    %v399 = vmul.f32 %v395, %v124
    %v400 = vmul.f32 %v398, %v124
    %v401 = vadd.f32 %v399, 1e-05
    %v402 = vadd.f32 %v400, 1e-05
    %v403 = vrsqrt.pop %v401
    %v404 = vrsqrt.pop %v402
    %v405 = vmul.f32 %v389, %v403
    %v406 = vmul.f32 %v390, %v404
    %v407 = vlaneseq
    %v408 = vshrl.u32 %v407, 7
    %v409 = vsub.s32 7, %v408
    %v410 = vrot.slane %v41, %v409
    %v411 = vmul.f32 %v405, %v410
    %v412 = vmul.f32 %v406, %v410
    %v413 = vlaneseq
    %v414 = vshrl.u32 %v413, 7
    %v415 = vsub.s32 0, %v414
    %v416 = vrot.slane %v42, %v415
    %v417 = vadd.f32 %v411, %v416
    %v418 = vadd.f32 %v412, %v416
    %v419 = vld [vmem:[%s2] sm:$0xf]
    %v420 = vld [vmem:[%s2 + $0x4] sm:$0xf]
    %v421 = vld [vmem:[%s2 + $0x8] sm:$0xf]
    %v422 = vld [vmem:[%s2 + $0xc] sm:$0xf]
    %v423 = vld [vmem:[%s2 + $0x10] sm:$0xf]
    %v424 = vld [vmem:[%s2 + $0x14] sm:$0xf]
    %v425 = vld [vmem:[%s2 + $0x18] sm:$0xf]
    %v426 = vld [vmem:[%s2 + $0x1c] sm:$0xf]
    %s427 = scalar_lea.vmem %s2, 32
    %v428 = vld [vmem:[%s427] sm:$0xf]
    %v429 = vld [vmem:[%s427 + $0x4] sm:$0xf]
    %v430 = vld [vmem:[%s427 + $0x8] sm:$0xf]
    %v431 = vld [vmem:[%s427 + $0xc] sm:$0xf]
    %v432 = vld [vmem:[%s427 + $0x10] sm:$0xf]
    %v433 = vld [vmem:[%s427 + $0x14] sm:$0xf]
    %v434 = vld [vmem:[%s427 + $0x18] sm:$0xf]
    %v435 = vld [vmem:[%s427 + $0x1c] sm:$0xf]
    %v436 = vld [vmem:[%s4] sm:$0x1]
    %v437 = vld [vmem:[%s4 + $0x1] sm:$0x1]
    %v438 = vpack.c.bf16 %v418, %v417
    %v439 = vlaneseq
    %v440 = vshrl.u32 %v439, 7
    %v441 = vsub.s32 0, %v440
    %v442 = vrot.slane %v436, %v441
    %v447 = vunpack.c.l.b16 %v419
    %v448 = vunpack.c.l.b16 %v420
    %v449 = vunpack.c.l.b16 %v421
    %v450 = vunpack.c.l.b16 %v422
    %v451 = vpack.c.b16 %v448, %v447
    %v452 = vpack.c.b16 %v450, %v449
    %v456 = vsel %vm117, %v438, 0
    %458 = vmatprep.subr.bf16.mxu0 0
    %459 = vmatpush1.bf16.msra.mxu0 %v451
    %460 = vmatprep.subr.bf16.mxu0 0
    %461 = vmatpush1.bf16.msra.mxu0 %v452
    %462 = vmatprep.subr.bf16.mxu0 0
    %463 = vmatpush1.bf16.msra.mxu0 0
    %464 = vmatprep.subr.bf16.mxu0 0
    %465 = vmatpush1.bf16.msra.mxu0 0
    %466 = vmatprep.subr.bf16.mxu0 0
    %467 = vmatpush1.bf16.msra.mxu0 0
    %468 = vmatprep.subr.bf16.mxu0 0
    %469 = vmatpush1.bf16.msra.mxu0 0
    %470 = vmatprep.subr.bf16.mxu0 0
    %471 = vmatpush1.bf16.msra.mxu0 0
    %472 = vmatprep.subr.bf16.mxu0 0
    %473 = vmatpush1.bf16.msra.mxu0 0
    %474 = vmatprep.subr.bf16.mxu0 0
    %475 = vmatpush1.bf16.msra.mxu0 0
    %476 = vmatprep.subr.bf16.mxu0 0
    %477 = vmatpush1.bf16.msra.mxu0 0
    %478 = vmatprep.subr.bf16.mxu0 0
    %479 = vmatpush1.bf16.msra.mxu0 0
    %480 = vmatprep.subr.bf16.mxu0 0
    %481 = vmatpush1.bf16.msra.mxu0 0
    %482 = vmatprep.subr.bf16.mxu0 0
    %483 = vmatpush1.bf16.msra.mxu0 0
    %484 = vmatprep.subr.bf16.mxu0 0
    %485 = vmatpush1.bf16.msra.mxu0 0
    %486 = vmatprep.subr.bf16.mxu0 0
    %487 = vmatpush1.bf16.msra.mxu0 0
    %488 = vmatprep.subr.bf16.mxu0 0
    %489 = vmatpush1.bf16.msra.mxu0 0
    %490 = vmatprep.mubr.bf16.mxu0 0
    %491 = vmatmul.mubr.bf16.gmra.mrb[0].mxu0 %v456
    %v492 = vpop.f32.mrb[0].mxu0
    %v493 = vadd.f32 %v442, %v492
    %v494 = vpop.f32.mrb[0].mxu0
    %v495 = vpop.f32.mrb[0].mxu0
    %v496 = vadd.f32 %v442, %v495
    %v497 = vpop.f32.mrb[0].mxu0
    %498 = vdwg.mxu0
    %v503 = vunpack.c.l.b16 %v423
    %v504 = vunpack.c.l.b16 %v424
    %v505 = vunpack.c.l.b16 %v425
    %v506 = vunpack.c.l.b16 %v426
    %v507 = vpack.c.b16 %v504, %v503
    %v508 = vpack.c.b16 %v506, %v505
    %v512 = vsel %vm117, 0, 0
    %514 = vmatprep.subr.bf16.mxu0 0
    %515 = vmatpush1.bf16.msra.mxu0 %v507
    %516 = vmatprep.subr.bf16.mxu0 0
    %517 = vmatpush1.bf16.msra.mxu0 %v508
    %518 = vmatprep.subr.bf16.mxu0 0
    %519 = vmatpush1.bf16.msra.mxu0 0
    %520 = vmatprep.subr.bf16.mxu0 0
    %521 = vmatpush1.bf16.msra.mxu0 0
    %522 = vmatprep.subr.bf16.mxu0 0
    %523 = vmatpush1.bf16.msra.mxu0 0
    %524 = vmatprep.subr.bf16.mxu0 0
    %525 = vmatpush1.bf16.msra.mxu0 0
    %526 = vmatprep.subr.bf16.mxu0 0
    %527 = vmatpush1.bf16.msra.mxu0 0
    %528 = vmatprep.subr.bf16.mxu0 0
    %529 = vmatpush1.bf16.msra.mxu0 0
    %530 = vmatprep.subr.bf16.mxu0 0
    %531 = vmatpush1.bf16.msra.mxu0 0
    %532 = vmatprep.subr.bf16.mxu0 0
    %533 = vmatpush1.bf16.msra.mxu0 0
    %534 = vmatprep.subr.bf16.mxu0 0
    %535 = vmatpush1.bf16.msra.mxu0 0
    %536 = vmatprep.subr.bf16.mxu0 0
    %537 = vmatpush1.bf16.msra.mxu0 0
    %538 = vmatprep.subr.bf16.mxu0 0
    %539 = vmatpush1.bf16.msra.mxu0 0
    %540 = vmatprep.subr.bf16.mxu0 0
    %541 = vmatpush1.bf16.msra.mxu0 0
    %542 = vmatprep.subr.bf16.mxu0 0
    %543 = vmatpush1.bf16.msra.mxu0 0
    %544 = vmatprep.subr.bf16.mxu0 0
    %545 = vmatpush1.bf16.msra.mxu0 0
    %546 = vmatprep.mubr.bf16.mxu0 0
    %547 = vmatmul.mubr.bf16.gmra.mrb[0].mxu0 %v512
    %v548 = vpop.f32.mrb[0].mxu0
    %v549 = vadd.f32 0.0, %v548
    %v550 = vpop.f32.mrb[0].mxu0
    %v551 = vpop.f32.mrb[0].mxu0
    %v552 = vpop.f32.mrb[0].mxu0
    %553 = vdwg.mxu0
    %v554 = vadd.f32 %v493, %v549
    %v555 = vxor.u32 %v554, 2147483648
    %v556 = vmul.f32 %v555, 1.442695
    %v557 = vpow.pop %v556
    %v558 = vadd.f32 %v557, 1.0
    %v559 = vrcp.pop %v558
    %v560 = vmul.f32 1.0, %v559
    %v561 = vmul.f32 %v560, 2.0
    %v562 = vsub.f32 %v561, 1.0
    %v563 = vmul.f32 %v560, 0.0
    %565 = vrot.lane.b32.xlu0 %v562, 64
    %v566 = vpop.permute.xlu0 %565
    %v568 = vmul.f32 %v560, %v566
    %570 = vrot.lane.b32.xlu0 %v568, 32
    %v571 = vpop.permute.xlu0 %570
    %v573 = vadd.f32 %v563, %v571
    %v574 = vtanh.pop %v573
    %576 = vrot.lane.b32.xlu0 %v574, 64
    %v577 = vpop.permute.xlu0 %576
    %v579 = vmul.f32 %v560, %v577
    %581 = vrot.lane.b32.xlu0 %v579, 32
    %v582 = vpop.permute.xlu0 %581
    %v584 = vsel %vm117, %v582, 0.0
    %v585 = vpack.c.bf16 %v584, %v584
    %v586 = vlaneseq
    %v587 = vshrl.u32 %v586, 7
    %v588 = vsub.s32 0, %v587
    %v589 = vrot.slane %v437, %v588
    %v598 = vunpack.c.l.b16 %v428
    %v599 = vunpack.c.l.b16 %v429
    %v600 = vunpack.c.l.b16 %v430
    %v601 = vunpack.c.l.b16 %v431
    %v602 = vunpack.c.l.b16 %v432
    %v603 = vunpack.c.l.b16 %v433
    %v604 = vunpack.c.l.b16 %v434
    %v605 = vunpack.c.l.b16 %v435
    %v606 = vpack.c.b16 %v599, %v598
    %v607 = vpack.c.b16 %v601, %v600
    %v608 = vpack.c.b16 %v603, %v602
    %v609 = vpack.c.b16 %v605, %v604
    %vm614 = vcmask 523264
    %v616 = vsel %vm614, %v585, 0
    %618 = vmatprep.subr.bf16.mxu0 0
    %619 = vmatpush1.bf16.msra.mxu0 %v606
    %620 = vmatprep.subr.bf16.mxu0 0
    %621 = vmatpush1.bf16.msra.mxu0 %v607
    %622 = vmatprep.subr.bf16.mxu0 0
    %623 = vmatpush1.bf16.msra.mxu0 %v608
    %624 = vmatprep.subr.bf16.mxu0 0
    %625 = vmatpush1.bf16.msra.mxu0 %v609
    %626 = vmatprep.subr.bf16.mxu0 0
    %627 = vmatpush1.bf16.msra.mxu0 0
    %628 = vmatprep.subr.bf16.mxu0 0
    %629 = vmatpush1.bf16.msra.mxu0 0
    %630 = vmatprep.subr.bf16.mxu0 0
    %631 = vmatpush1.bf16.msra.mxu0 0
    %632 = vmatprep.subr.bf16.mxu0 0
    %633 = vmatpush1.bf16.msra.mxu0 0
    %634 = vmatprep.subr.bf16.mxu0 0
    %635 = vmatpush1.bf16.msra.mxu0 0
    %636 = vmatprep.subr.bf16.mxu0 0
    %637 = vmatpush1.bf16.msra.mxu0 0
    %638 = vmatprep.subr.bf16.mxu0 0
    %639 = vmatpush1.bf16.msra.mxu0 0
    %640 = vmatprep.subr.bf16.mxu0 0
    %641 = vmatpush1.bf16.msra.mxu0 0
    %642 = vmatprep.subr.bf16.mxu0 0
    %643 = vmatpush1.bf16.msra.mxu0 0
    %644 = vmatprep.subr.bf16.mxu0 0
    %645 = vmatpush1.bf16.msra.mxu0 0
    %646 = vmatprep.subr.bf16.mxu0 0
    %647 = vmatpush1.bf16.msra.mxu0 0
    %648 = vmatprep.subr.bf16.mxu0 0
    %649 = vmatpush1.bf16.msra.mxu0 0
    %650 = vmatprep.mubr.bf16.mxu0 0
    %651 = vmatmul.mubr.bf16.gmra.mrb[0].mxu0 %v616
    %v652 = vpop.f32.mrb[0].mxu0
    %v653 = vadd.f32 %v589, %v652
    %v654 = vpop.f32.mrb[0].mxu0
    %v655 = vpop.f32.mrb[0].mxu0
    %v656 = vpop.f32.mrb[0].mxu0
    %657 = vdwg.mxu0
    %v658 = vxor.u32 %v653, 2147483648
    %v659 = vmul.f32 %v658, 1.442695
    %v660 = vpow.pop %v659
    %v661 = vadd.f32 %v660, 1.0
    %v662 = vrcp.pop %v661
    %v663 = vmul.f32 1.0, %v662
    %v664 = vmul.f32 %v663, 2.0
    %v665 = vsub.f32 %v664, 1.0
    %v666 = vmul.f32 %v663, 0.0
    %668 = vrot.lane.b32.xlu0 %v665, 64
    %v669 = vpop.permute.xlu0 %668
    %v671 = vmul.f32 %v663, %v669
    %673 = vrot.lane.b32.xlu0 %v671, 32
    %v674 = vpop.permute.xlu0 %673
    %v676 = vadd.f32 %v666, %v674
    %v677 = vtanh.pop %v676
    %679 = vrot.lane.b32.xlu0 %v677, 64
    %v680 = vpop.permute.xlu0 %679
    %v682 = vmul.f32 %v663, %v680
    %v683 = vpack.c.bf16 %v579, %v579
    %685 = vrot.lane.b32.xlu0 %v683, 32
    %v686 = vpop.permute.xlu0 %685
    %v688 = vsel %vm117, %v686, 0
    %690 = vmatprep.subr.bf16.mxu0 0
    %691 = vmatpush1.bf16.msra.mxu0 %v507
    %692 = vmatprep.subr.bf16.mxu0 0
    %693 = vmatpush1.bf16.msra.mxu0 %v508
    %694 = vmatprep.subr.bf16.mxu0 0
    %695 = vmatpush1.bf16.msra.mxu0 0
    %696 = vmatprep.subr.bf16.mxu0 0
    %697 = vmatpush1.bf16.msra.mxu0 0
    %698 = vmatprep.subr.bf16.mxu0 0
    %699 = vmatpush1.bf16.msra.mxu0 0
    %700 = vmatprep.subr.bf16.mxu0 0
    %701 = vmatpush1.bf16.msra.mxu0 0
    %702 = vmatprep.subr.bf16.mxu0 0
    %703 = vmatpush1.bf16.msra.mxu0 0
    %704 = vmatprep.subr.bf16.mxu0 0
    %705 = vmatpush1.bf16.msra.mxu0 0
    %706 = vmatprep.subr.bf16.mxu0 0
    %707 = vmatpush1.bf16.msra.mxu0 0
    %708 = vmatprep.subr.bf16.mxu0 0
    %709 = vmatpush1.bf16.msra.mxu0 0
    %710 = vmatprep.subr.bf16.mxu0 0
    %711 = vmatpush1.bf16.msra.mxu0 0
    %712 = vmatprep.subr.bf16.mxu0 0
    %713 = vmatpush1.bf16.msra.mxu0 0
    %714 = vmatprep.subr.bf16.mxu0 0
    %715 = vmatpush1.bf16.msra.mxu0 0
    %716 = vmatprep.subr.bf16.mxu0 0
    %717 = vmatpush1.bf16.msra.mxu0 0
    %718 = vmatprep.subr.bf16.mxu0 0
    %719 = vmatpush1.bf16.msra.mxu0 0
    %720 = vmatprep.subr.bf16.mxu0 0
    %721 = vmatpush1.bf16.msra.mxu0 0
    %722 = vmatprep.mubr.bf16.mxu0 0
    %723 = vmatmul.mubr.bf16.gmra.mrb[0].mxu0 %v688
    %v724 = vpop.f32.mrb[0].mxu0
    %v725 = vadd.f32 0.0, %v724
    %v726 = vpop.f32.mrb[0].mxu0
    %v727 = vpop.f32.mrb[0].mxu0
    %v728 = vpop.f32.mrb[0].mxu0
    %729 = vdwg.mxu0
    %v731 = vrot.slane %v725, 6
    %v733 = vadd.f32 %v493, %v731
    %v734 = vxor.u32 %v733, 2147483648
    %v735 = vmul.f32 %v734, 1.442695
    %v736 = vpow.pop %v735
    %v737 = vadd.f32 %v736, 1.0
    %v738 = vrcp.pop %v737
    %v739 = vmul.f32 1.0, %v738
    %v740 = vmul.f32 %v739, 2.0
    %v741 = vsub.f32 %v740, 1.0
    %v743 = vrot.slane %v573, 6
    %v745 = vmul.f32 %v739, %v743
    %747 = vrot.lane.b32.xlu0 %v741, 64
    %v748 = vpop.permute.xlu0 %747
    %v750 = vmul.f32 %v739, %v748
    %752 = vrot.lane.b32.xlu0 %v750, 32
    %v753 = vpop.permute.xlu0 %752
    %v755 = vadd.f32 %v745, %v753
    %v756 = vtanh.pop %v755
    %758 = vrot.lane.b32.xlu0 %v756, 64
    %v759 = vpop.permute.xlu0 %758
    %v761 = vmul.f32 %v739, %v759
    %763 = vrot.lane.b32.xlu0 %v761, 32
    %v764 = vpop.permute.xlu0 %763
    %v767 = vrot.slane %v682, 6
    %768 = vrot.lane.b32.xlu0 %v767, 64
    %v769 = vpop.permute.xlu0 %768
    %v771 = vsel %vm117, %v764, %v769
    %v772 = vpack.c.bf16 %v771, %v771
    %v774 = vrot.slane %v772, 1
    %v776 = vsel %vm614, %v774, 0
    %778 = vmatprep.subr.bf16.mxu0 0
    %779 = vmatpush1.bf16.msra.mxu0 %v606
    %780 = vmatprep.subr.bf16.mxu0 0
    %781 = vmatpush1.bf16.msra.mxu0 %v607
    %782 = vmatprep.subr.bf16.mxu0 0
    %783 = vmatpush1.bf16.msra.mxu0 %v608
    %784 = vmatprep.subr.bf16.mxu0 0
    %785 = vmatpush1.bf16.msra.mxu0 %v609
    %786 = vmatprep.subr.bf16.mxu0 0
    %787 = vmatpush1.bf16.msra.mxu0 0
    %788 = vmatprep.subr.bf16.mxu0 0
    %789 = vmatpush1.bf16.msra.mxu0 0
    %790 = vmatprep.subr.bf16.mxu0 0
    %791 = vmatpush1.bf16.msra.mxu0 0
    %792 = vmatprep.subr.bf16.mxu0 0
    %793 = vmatpush1.bf16.msra.mxu0 0
    %794 = vmatprep.subr.bf16.mxu0 0
    %795 = vmatpush1.bf16.msra.mxu0 0
    %796 = vmatprep.subr.bf16.mxu0 0
    %797 = vmatpush1.bf16.msra.mxu0 0
    %798 = vmatprep.subr.bf16.mxu0 0
    %799 = vmatpush1.bf16.msra.mxu0 0
    %800 = vmatprep.subr.bf16.mxu0 0
    %801 = vmatpush1.bf16.msra.mxu0 0
    %802 = vmatprep.subr.bf16.mxu0 0
    %803 = vmatpush1.bf16.msra.mxu0 0
    %804 = vmatprep.subr.bf16.mxu0 0
    %805 = vmatpush1.bf16.msra.mxu0 0
    %806 = vmatprep.subr.bf16.mxu0 0
    %807 = vmatpush1.bf16.msra.mxu0 0
    %808 = vmatprep.subr.bf16.mxu0 0
    %809 = vmatpush1.bf16.msra.mxu0 0
    %810 = vmatprep.mubr.bf16.mxu0 0
    %811 = vmatmul.mubr.bf16.gmra.mrb[0].mxu0 %v776
    %v812 = vpop.f32.mrb[0].mxu0
    %v813 = vadd.f32 %v589, %v812
    %v814 = vpop.f32.mrb[0].mxu0
    %v815 = vpop.f32.mrb[0].mxu0
    %v816 = vpop.f32.mrb[0].mxu0
    %817 = vdwg.mxu0
    %v818 = vxor.u32 %v813, 2147483648
    %v819 = vmul.f32 %v818, 1.442695
    %v820 = vpow.pop %v819
    %v821 = vadd.f32 %v820, 1.0
    %v822 = vrcp.pop %v821
    %v823 = vmul.f32 1.0, %v822
    %v824 = vmul.f32 %v823, 2.0
    %v825 = vsub.f32 %v824, 1.0
    %v826 = vmul.f32 %v823, %v676
    %828 = vrot.lane.b32.xlu0 %v825, 64
    %v829 = vpop.permute.xlu0 %828
    %v831 = vmul.f32 %v823, %v829
    %833 = vrot.lane.b32.xlu0 %v831, 32
    %v834 = vpop.permute.xlu0 %833
    %v836 = vadd.f32 %v826, %v834
    %v837 = vtanh.pop %v836
    %839 = vrot.lane.b32.xlu0 %v837, 64
    %v840 = vpop.permute.xlu0 %839
    %v842 = vmul.f32 %v823, %v840
    %v843 = vpack.c.bf16 %v761, %v761
    %v845 = vrot.slane %v843, 1
    %846 = vrot.lane.b32.xlu0 %v845, 32
    %v847 = vpop.permute.xlu0 %846
    %v849 = vsel %vm117, %v847, 0
    %851 = vmatprep.subr.bf16.mxu0 0
    %852 = vmatpush1.bf16.msra.mxu0 %v507
    %853 = vmatprep.subr.bf16.mxu0 0
    %854 = vmatpush1.bf16.msra.mxu0 %v508
    %855 = vmatprep.subr.bf16.mxu0 0
    %856 = vmatpush1.bf16.msra.mxu0 0
    %857 = vmatprep.subr.bf16.mxu0 0
    %858 = vmatpush1.bf16.msra.mxu0 0
    %859 = vmatprep.subr.bf16.mxu0 0
    %860 = vmatpush1.bf16.msra.mxu0 0
    %861 = vmatprep.subr.bf16.mxu0 0
    %862 = vmatpush1.bf16.msra.mxu0 0
    %863 = vmatprep.subr.bf16.mxu0 0
    %864 = vmatpush1.bf16.msra.mxu0 0
    %865 = vmatprep.subr.bf16.mxu0 0
    %866 = vmatpush1.bf16.msra.mxu0 0
    %867 = vmatprep.subr.bf16.mxu0 0
    %868 = vmatpush1.bf16.msra.mxu0 0
    %869 = vmatprep.subr.bf16.mxu0 0
    %870 = vmatpush1.bf16.msra.mxu0 0
    %871 = vmatprep.subr.bf16.mxu0 0
    %872 = vmatpush1.bf16.msra.mxu0 0
    %873 = vmatprep.subr.bf16.mxu0 0
    %874 = vmatpush1.bf16.msra.mxu0 0
    %875 = vmatprep.subr.bf16.mxu0 0
    %876 = vmatpush1.bf16.msra.mxu0 0
    %877 = vmatprep.subr.bf16.mxu0 0
    %878 = vmatpush1.bf16.msra.mxu0 0
    %879 = vmatprep.subr.bf16.mxu0 0
    %880 = vmatpush1.bf16.msra.mxu0 0
    %881 = vmatprep.subr.bf16.mxu0 0
    %882 = vmatpush1.bf16.msra.mxu0 0
    %883 = vmatprep.mubr.bf16.mxu0 0
    %884 = vmatmul.mubr.bf16.gmra.mrb[0].mxu0 %v849
    %v885 = vpop.f32.mrb[0].mxu0
    %v886 = vadd.f32 0.0, %v885
    %v887 = vpop.f32.mrb[0].mxu0
    %v888 = vpop.f32.mrb[0].mxu0
    %v889 = vpop.f32.mrb[0].mxu0
    %890 = vdwg.mxu0
    %v892 = vrot.slane %v886, 4
    %v894 = vadd.f32 %v493, %v892
    %v895 = vxor.u32 %v894, 2147483648
    %v896 = vmul.f32 %v895, 1.442695
    %v897 = vpow.pop %v896
    %v898 = vadd.f32 %v897, 1.0
    %v899 = vrcp.pop %v898
    %v900 = vmul.f32 1.0, %v899
    %v901 = vmul.f32 %v900, 2.0
    %v902 = vsub.f32 %v901, 1.0
    %v904 = vrot.slane %v755, 6
    %v906 = vmul.f32 %v900, %v904
    %908 = vrot.lane.b32.xlu0 %v902, 64
    %v909 = vpop.permute.xlu0 %908
    %v911 = vmul.f32 %v900, %v909
    %913 = vrot.lane.b32.xlu0 %v911, 32
    %v914 = vpop.permute.xlu0 %913
    %v916 = vadd.f32 %v906, %v914
    %v917 = vtanh.pop %v916
    %919 = vrot.lane.b32.xlu0 %v917, 64
    %v920 = vpop.permute.xlu0 %919
    %v922 = vmul.f32 %v900, %v920
    %924 = vrot.lane.b32.xlu0 %v922, 32
    %v925 = vpop.permute.xlu0 %924
    %v928 = vrot.slane %v842, 4
    %929 = vrot.lane.b32.xlu0 %v928, 64
    %v930 = vpop.permute.xlu0 %929
    %v932 = vsel %vm117, %v925, %v930
    %v933 = vpack.c.bf16 %v932, %v932
    %v935 = vrot.slane %v933, 2
    %v937 = vsel %vm614, %v935, 0
    %939 = vmatprep.subr.bf16.mxu0 0
    %940 = vmatpush1.bf16.msra.mxu0 %v606
    %941 = vmatprep.subr.bf16.mxu0 0
    %942 = vmatpush1.bf16.msra.mxu0 %v607
    %943 = vmatprep.subr.bf16.mxu0 0
    %944 = vmatpush1.bf16.msra.mxu0 %v608
    %945 = vmatprep.subr.bf16.mxu0 0
    %946 = vmatpush1.bf16.msra.mxu0 %v609
    %947 = vmatprep.subr.bf16.mxu0 0
    %948 = vmatpush1.bf16.msra.mxu0 0
    %949 = vmatprep.subr.bf16.mxu0 0
    %950 = vmatpush1.bf16.msra.mxu0 0
    %951 = vmatprep.subr.bf16.mxu0 0
    %952 = vmatpush1.bf16.msra.mxu0 0
    %953 = vmatprep.subr.bf16.mxu0 0
    %954 = vmatpush1.bf16.msra.mxu0 0
    %955 = vmatprep.subr.bf16.mxu0 0
    %956 = vmatpush1.bf16.msra.mxu0 0
    %957 = vmatprep.subr.bf16.mxu0 0
    %958 = vmatpush1.bf16.msra.mxu0 0
    %959 = vmatprep.subr.bf16.mxu0 0
    %960 = vmatpush1.bf16.msra.mxu0 0
    %961 = vmatprep.subr.bf16.mxu0 0
    %962 = vmatpush1.bf16.msra.mxu0 0
    %963 = vmatprep.subr.bf16.mxu0 0
    %964 = vmatpush1.bf16.msra.mxu0 0
    %965 = vmatprep.subr.bf16.mxu0 0
    %966 = vmatpush1.bf16.msra.mxu0 0
    %967 = vmatprep.subr.bf16.mxu0 0
    %968 = vmatpush1.bf16.msra.mxu0 0
    %969 = vmatprep.subr.bf16.mxu0 0
    %970 = vmatpush1.bf16.msra.mxu0 0
    %971 = vmatprep.mubr.bf16.mxu0 0
    %972 = vmatmul.mubr.bf16.gmra.mrb[0].mxu0 %v937
    %v973 = vpop.f32.mrb[0].mxu0
    %v974 = vadd.f32 %v589, %v973
    %v975 = vpop.f32.mrb[0].mxu0
    %v976 = vpop.f32.mrb[0].mxu0
    %v977 = vpop.f32.mrb[0].mxu0
    %978 = vdwg.mxu0
    %v979 = vxor.u32 %v974, 2147483648
    %v980 = vmul.f32 %v979, 1.442695
    %v981 = vpow.pop %v980
    %v982 = vadd.f32 %v981, 1.0
    %v983 = vrcp.pop %v982
    %v984 = vmul.f32 1.0, %v983
    %v985 = vmul.f32 %v984, 2.0
    %v986 = vsub.f32 %v985, 1.0
    %v987 = vmul.f32 %v984, %v836
    %989 = vrot.lane.b32.xlu0 %v986, 64
    %v990 = vpop.permute.xlu0 %989
    %v992 = vmul.f32 %v984, %v990
    %994 = vrot.lane.b32.xlu0 %v992, 32
    %v995 = vpop.permute.xlu0 %994
    %v997 = vadd.f32 %v987, %v995
    %v998 = vtanh.pop %v997
    %1000 = vrot.lane.b32.xlu0 %v998, 64
    %v1001 = vpop.permute.xlu0 %1000
    %v1003 = vmul.f32 %v984, %v1001
    %v1004 = vpack.c.bf16 %v922, %v922
    %v1006 = vrot.slane %v1004, 2
    %1007 = vrot.lane.b32.xlu0 %v1006, 32
    %v1008 = vpop.permute.xlu0 %1007
    %v1010 = vsel %vm117, %v1008, 0
    %1012 = vmatprep.subr.bf16.mxu0 0
    %1013 = vmatpush1.bf16.msra.mxu0 %v507
    %1014 = vmatprep.subr.bf16.mxu0 0
    %1015 = vmatpush1.bf16.msra.mxu0 %v508
    %1016 = vmatprep.subr.bf16.mxu0 0
    %1017 = vmatpush1.bf16.msra.mxu0 0
    %1018 = vmatprep.subr.bf16.mxu0 0
    %1019 = vmatpush1.bf16.msra.mxu0 0
    %1020 = vmatprep.subr.bf16.mxu0 0
    %1021 = vmatpush1.bf16.msra.mxu0 0
    %1022 = vmatprep.subr.bf16.mxu0 0
    %1023 = vmatpush1.bf16.msra.mxu0 0
    %1024 = vmatprep.subr.bf16.mxu0 0
    %1025 = vmatpush1.bf16.msra.mxu0 0
    %1026 = vmatprep.subr.bf16.mxu0 0
    %1027 = vmatpush1.bf16.msra.mxu0 0
    %1028 = vmatprep.subr.bf16.mxu0 0
    %1029 = vmatpush1.bf16.msra.mxu0 0
    %1030 = vmatprep.subr.bf16.mxu0 0
    %1031 = vmatpush1.bf16.msra.mxu0 0
    %1032 = vmatprep.subr.bf16.mxu0 0
    %1033 = vmatpush1.bf16.msra.mxu0 0
    %1034 = vmatprep.subr.bf16.mxu0 0
    %1035 = vmatpush1.bf16.msra.mxu0 0
    %1036 = vmatprep.subr.bf16.mxu0 0
    %1037 = vmatpush1.bf16.msra.mxu0 0
    %1038 = vmatprep.subr.bf16.mxu0 0
    %1039 = vmatpush1.bf16.msra.mxu0 0
    %1040 = vmatprep.subr.bf16.mxu0 0
    %1041 = vmatpush1.bf16.msra.mxu0 0
    %1042 = vmatprep.subr.bf16.mxu0 0
    %1043 = vmatpush1.bf16.msra.mxu0 0
    %1044 = vmatprep.mubr.bf16.mxu0 0
    %1045 = vmatmul.mubr.bf16.gmra.mrb[0].mxu0 %v1010
    %v1046 = vpop.f32.mrb[0].mxu0
    %v1047 = vadd.f32 0.0, %v1046
    %v1048 = vpop.f32.mrb[0].mxu0
    %v1049 = vpop.f32.mrb[0].mxu0
    %v1050 = vpop.f32.mrb[0].mxu0
    %1051 = vdwg.mxu0
    %v1053 = vrot.slane %v1047, 2
    %v1055 = vadd.f32 %v493, %v1053
    %v1056 = vxor.u32 %v1055, 2147483648
    %v1057 = vmul.f32 %v1056, 1.442695
    %v1058 = vpow.pop %v1057
    %v1059 = vadd.f32 %v1058, 1.0
    %v1060 = vrcp.pop %v1059
    %v1061 = vmul.f32 1.0, %v1060
    %v1062 = vmul.f32 %v1061, 2.0
    %v1063 = vsub.f32 %v1062, 1.0
    %v1065 = vrot.slane %v916, 6
    %v1067 = vmul.f32 %v1061, %v1065
    %1069 = vrot.lane.b32.xlu0 %v1063, 64
    %v1070 = vpop.permute.xlu0 %1069
    %v1072 = vmul.f32 %v1061, %v1070
    %1074 = vrot.lane.b32.xlu0 %v1072, 32
    %v1075 = vpop.permute.xlu0 %1074
    %v1077 = vadd.f32 %v1067, %v1075
    %v1078 = vtanh.pop %v1077
    %1080 = vrot.lane.b32.xlu0 %v1078, 64
    %v1081 = vpop.permute.xlu0 %1080
    %v1083 = vmul.f32 %v1061, %v1081
    %1085 = vrot.lane.b32.xlu0 %v1083, 32
    %v1086 = vpop.permute.xlu0 %1085
    %v1089 = vrot.slane %v1003, 2
    %1090 = vrot.lane.b32.xlu0 %v1089, 64
    %v1091 = vpop.permute.xlu0 %1090
    %v1093 = vsel %vm117, %v1086, %v1091
    %v1094 = vpack.c.bf16 %v1093, %v1093
    %v1096 = vrot.slane %v1094, 3
    %v1098 = vsel %vm614, %v1096, 0
    %1100 = vmatprep.subr.bf16.mxu0 0
    %1101 = vmatpush1.bf16.msra.mxu0 %v606
    %1102 = vmatprep.subr.bf16.mxu0 0
    %1103 = vmatpush1.bf16.msra.mxu0 %v607
    %1104 = vmatprep.subr.bf16.mxu0 0
    %1105 = vmatpush1.bf16.msra.mxu0 %v608
    %1106 = vmatprep.subr.bf16.mxu0 0
    %1107 = vmatpush1.bf16.msra.mxu0 %v609
    %1108 = vmatprep.subr.bf16.mxu0 0
    %1109 = vmatpush1.bf16.msra.mxu0 0
    %1110 = vmatprep.subr.bf16.mxu0 0
    %1111 = vmatpush1.bf16.msra.mxu0 0
    %1112 = vmatprep.subr.bf16.mxu0 0
    %1113 = vmatpush1.bf16.msra.mxu0 0
    %1114 = vmatprep.subr.bf16.mxu0 0
    %1115 = vmatpush1.bf16.msra.mxu0 0
    %1116 = vmatprep.subr.bf16.mxu0 0
    %1117 = vmatpush1.bf16.msra.mxu0 0
    %1118 = vmatprep.subr.bf16.mxu0 0
    %1119 = vmatpush1.bf16.msra.mxu0 0
    %1120 = vmatprep.subr.bf16.mxu0 0
    %1121 = vmatpush1.bf16.msra.mxu0 0
    %1122 = vmatprep.subr.bf16.mxu0 0
    %1123 = vmatpush1.bf16.msra.mxu0 0
    %1124 = vmatprep.subr.bf16.mxu0 0
    %1125 = vmatpush1.bf16.msra.mxu0 0
    %1126 = vmatprep.subr.bf16.mxu0 0
    %1127 = vmatpush1.bf16.msra.mxu0 0
    %1128 = vmatprep.subr.bf16.mxu0 0
    %1129 = vmatpush1.bf16.msra.mxu0 0
    %1130 = vmatprep.subr.bf16.mxu0 0
    %1131 = vmatpush1.bf16.msra.mxu0 0
    %1132 = vmatprep.mubr.bf16.mxu0 0
    %1133 = vmatmul.mubr.bf16.gmra.mrb[0].mxu0 %v1098
    %v1134 = vpop.f32.mrb[0].mxu0
    %v1135 = vadd.f32 %v589, %v1134
    %v1136 = vpop.f32.mrb[0].mxu0
    %v1137 = vpop.f32.mrb[0].mxu0
    %v1138 = vpop.f32.mrb[0].mxu0
    %1139 = vdwg.mxu0
    %v1140 = vxor.u32 %v1135, 2147483648
    %v1141 = vmul.f32 %v1140, 1.442695
    %v1142 = vpow.pop %v1141
    %v1143 = vadd.f32 %v1142, 1.0
    %v1144 = vrcp.pop %v1143
    %v1145 = vmul.f32 1.0, %v1144
    %v1146 = vmul.f32 %v1145, 2.0
    %v1147 = vsub.f32 %v1146, 1.0
    %v1148 = vmul.f32 %v1145, %v997
    %1150 = vrot.lane.b32.xlu0 %v1147, 64
    %v1151 = vpop.permute.xlu0 %1150
    %v1153 = vmul.f32 %v1145, %v1151
    %1155 = vrot.lane.b32.xlu0 %v1153, 32
    %v1156 = vpop.permute.xlu0 %1155
    %v1158 = vadd.f32 %v1148, %v1156
    %v1159 = vtanh.pop %v1158
    %1161 = vrot.lane.b32.xlu0 %v1159, 64
    %v1162 = vpop.permute.xlu0 %1161
    %v1164 = vmul.f32 %v1145, %v1162
    %v1165 = vpack.c.bf16 %v1083, %v1083
    %v1167 = vrot.slane %v1165, 3
    %1168 = vrot.lane.b32.xlu0 %v1167, 32
    %v1169 = vpop.permute.xlu0 %1168
    %v1171 = vsel %vm117, %v1169, 0
    %1173 = vmatprep.subr.bf16.mxu0 0
    %1174 = vmatpush1.bf16.msra.mxu0 %v507
    %1175 = vmatprep.subr.bf16.mxu0 0
    %1176 = vmatpush1.bf16.msra.mxu0 %v508
    %1177 = vmatprep.subr.bf16.mxu0 0
    %1178 = vmatpush1.bf16.msra.mxu0 0
    %1179 = vmatprep.subr.bf16.mxu0 0
    %1180 = vmatpush1.bf16.msra.mxu0 0
    %1181 = vmatprep.subr.bf16.mxu0 0
    %1182 = vmatpush1.bf16.msra.mxu0 0
    %1183 = vmatprep.subr.bf16.mxu0 0
    %1184 = vmatpush1.bf16.msra.mxu0 0
    %1185 = vmatprep.subr.bf16.mxu0 0
    %1186 = vmatpush1.bf16.msra.mxu0 0
    %1187 = vmatprep.subr.bf16.mxu0 0
    %1188 = vmatpush1.bf16.msra.mxu0 0
    %1189 = vmatprep.subr.bf16.mxu0 0
    %1190 = vmatpush1.bf16.msra.mxu0 0
    %1191 = vmatprep.subr.bf16.mxu0 0
    %1192 = vmatpush1.bf16.msra.mxu0 0
    %1193 = vmatprep.subr.bf16.mxu0 0
    %1194 = vmatpush1.bf16.msra.mxu0 0
    %1195 = vmatprep.subr.bf16.mxu0 0
    %1196 = vmatpush1.bf16.msra.mxu0 0
    %1197 = vmatprep.subr.bf16.mxu0 0
    %1198 = vmatpush1.bf16.msra.mxu0 0
    %1199 = vmatprep.subr.bf16.mxu0 0
    %1200 = vmatpush1.bf16.msra.mxu0 0
    %1201 = vmatprep.subr.bf16.mxu0 0
    %1202 = vmatpush1.bf16.msra.mxu0 0
    %1203 = vmatprep.subr.bf16.mxu0 0
    %1204 = vmatpush1.bf16.msra.mxu0 0
    %1205 = vmatprep.mubr.bf16.mxu0 0
    %1206 = vmatmul.mubr.bf16.gmra.mrb[0].mxu0 %v1171
    %v1207 = vpop.f32.mrb[0].mxu0
    %v1208 = vadd.f32 0.0, %v1207
    %v1209 = vpop.f32.mrb[0].mxu0
    %v1210 = vpop.f32.mrb[0].mxu0
    %v1211 = vpop.f32.mrb[0].mxu0
    %1212 = vdwg.mxu0
    %v1213 = vadd.f32 %v496, %v1208
    %v1214 = vxor.u32 %v1213, 2147483648
    %v1215 = vmul.f32 %v1214, 1.442695
    %v1216 = vpow.pop %v1215
    %v1217 = vadd.f32 %v1216, 1.0
    %v1218 = vrcp.pop %v1217
    %v1219 = vmul.f32 1.0, %v1218
    %v1220 = vmul.f32 %v1219, 2.0
    %v1221 = vsub.f32 %v1220, 1.0
    %v1223 = vrot.slane %v1077, 6
    %v1225 = vmul.f32 %v1219, %v1223
    %1227 = vrot.lane.b32.xlu0 %v1221, 64
    %v1228 = vpop.permute.xlu0 %1227
    %v1230 = vmul.f32 %v1219, %v1228
    %1232 = vrot.lane.b32.xlu0 %v1230, 32
    %v1233 = vpop.permute.xlu0 %1232
    %v1235 = vadd.f32 %v1225, %v1233
    %v1236 = vtanh.pop %v1235
    %1238 = vrot.lane.b32.xlu0 %v1236, 64
    %v1239 = vpop.permute.xlu0 %1238
    %v1241 = vmul.f32 %v1219, %v1239
    %1243 = vrot.lane.b32.xlu0 %v1241, 32
    %v1244 = vpop.permute.xlu0 %1243
    %1247 = vrot.lane.b32.xlu0 %v1164, 64
    %v1248 = vpop.permute.xlu0 %1247
    %v1250 = vsel %vm117, %v1244, %v1248
    %v1251 = vpack.c.bf16 %v1250, %v1250
    %v1253 = vsel %vm614, %v1251, 0
    %1255 = vmatprep.subr.bf16.mxu0 0
    %1256 = vmatpush1.bf16.msra.mxu0 %v606
    %1257 = vmatprep.subr.bf16.mxu0 0
    %1258 = vmatpush1.bf16.msra.mxu0 %v607
    %1259 = vmatprep.subr.bf16.mxu0 0
    %1260 = vmatpush1.bf16.msra.mxu0 %v608
    %1261 = vmatprep.subr.bf16.mxu0 0
    %1262 = vmatpush1.bf16.msra.mxu0 %v609
    %1263 = vmatprep.subr.bf16.mxu0 0
    %1264 = vmatpush1.bf16.msra.mxu0 0
    %1265 = vmatprep.subr.bf16.mxu0 0
    %1266 = vmatpush1.bf16.msra.mxu0 0
    %1267 = vmatprep.subr.bf16.mxu0 0
    %1268 = vmatpush1.bf16.msra.mxu0 0
    %1269 = vmatprep.subr.bf16.mxu0 0
    %1270 = vmatpush1.bf16.msra.mxu0 0
    %1271 = vmatprep.subr.bf16.mxu0 0
    %1272 = vmatpush1.bf16.msra.mxu0 0
    %1273 = vmatprep.subr.bf16.mxu0 0
    %1274 = vmatpush1.bf16.msra.mxu0 0
    %1275 = vmatprep.subr.bf16.mxu0 0
    %1276 = vmatpush1.bf16.msra.mxu0 0
    %1277 = vmatprep.subr.bf16.mxu0 0
    %1278 = vmatpush1.bf16.msra.mxu0 0
    %1279 = vmatprep.subr.bf16.mxu0 0
    %1280 = vmatpush1.bf16.msra.mxu0 0
    %1281 = vmatprep.subr.bf16.mxu0 0
    %1282 = vmatpush1.bf16.msra.mxu0 0
    %1283 = vmatprep.subr.bf16.mxu0 0
    %1284 = vmatpush1.bf16.msra.mxu0 0
    %1285 = vmatprep.subr.bf16.mxu0 0
    %1286 = vmatpush1.bf16.msra.mxu0 0
    %1287 = vmatprep.mubr.bf16.mxu0 0
    %1288 = vmatmul.mubr.bf16.gmra.mrb[0].mxu0 %v1253
    %v1289 = vpop.f32.mrb[0].mxu0
    %v1290 = vadd.f32 %v589, %v1289
    %v1291 = vpop.f32.mrb[0].mxu0
    %v1292 = vpop.f32.mrb[0].mxu0
    %v1293 = vpop.f32.mrb[0].mxu0
    %1294 = vdwg.mxu0
    %v1295 = vxor.u32 %v1290, 2147483648
    %v1296 = vmul.f32 %v1295, 1.442695
    %v1297 = vpow.pop %v1296
    %v1298 = vadd.f32 %v1297, 1.0
    %v1299 = vrcp.pop %v1298
    %v1300 = vmul.f32 1.0, %v1299
    %v1301 = vmul.f32 %v1300, 2.0
    %v1302 = vsub.f32 %v1301, 1.0
    %v1303 = vmul.f32 %v1300, %v1158
    %1305 = vrot.lane.b32.xlu0 %v1302, 64
    %v1306 = vpop.permute.xlu0 %1305
    %v1308 = vmul.f32 %v1300, %v1306
    %1310 = vrot.lane.b32.xlu0 %v1308, 32
    %v1311 = vpop.permute.xlu0 %1310
    %v1313 = vadd.f32 %v1303, %v1311
    %v1314 = vtanh.pop %v1313
    %1316 = vrot.lane.b32.xlu0 %v1314, 64
    %v1317 = vpop.permute.xlu0 %1316
    %v1319 = vmul.f32 %v1300, %v1317
    %v1320 = vpack.c.bf16 %v1241, %v1241
    %1322 = vrot.lane.b32.xlu0 %v1320, 32
    %v1323 = vpop.permute.xlu0 %1322
    %v1325 = vsel %vm117, %v1323, 0
    %1327 = vmatprep.subr.bf16.mxu0 0
    %1328 = vmatpush1.bf16.msra.mxu0 %v507
    %1329 = vmatprep.subr.bf16.mxu0 0
    %1330 = vmatpush1.bf16.msra.mxu0 %v508
    %1331 = vmatprep.subr.bf16.mxu0 0
    %1332 = vmatpush1.bf16.msra.mxu0 0
    %1333 = vmatprep.subr.bf16.mxu0 0
    %1334 = vmatpush1.bf16.msra.mxu0 0
    %1335 = vmatprep.subr.bf16.mxu0 0
    %1336 = vmatpush1.bf16.msra.mxu0 0
    %1337 = vmatprep.subr.bf16.mxu0 0
    %1338 = vmatpush1.bf16.msra.mxu0 0
    %1339 = vmatprep.subr.bf16.mxu0 0
    %1340 = vmatpush1.bf16.msra.mxu0 0
    %1341 = vmatprep.subr.bf16.mxu0 0
    %1342 = vmatpush1.bf16.msra.mxu0 0
    %1343 = vmatprep.subr.bf16.mxu0 0
    %1344 = vmatpush1.bf16.msra.mxu0 0
    %1345 = vmatprep.subr.bf16.mxu0 0
    %1346 = vmatpush1.bf16.msra.mxu0 0
    %1347 = vmatprep.subr.bf16.mxu0 0
    %1348 = vmatpush1.bf16.msra.mxu0 0
    %1349 = vmatprep.subr.bf16.mxu0 0
    %1350 = vmatpush1.bf16.msra.mxu0 0
    %1351 = vmatprep.subr.bf16.mxu0 0
    %1352 = vmatpush1.bf16.msra.mxu0 0
    %1353 = vmatprep.subr.bf16.mxu0 0
    %1354 = vmatpush1.bf16.msra.mxu0 0
    %1355 = vmatprep.subr.bf16.mxu0 0
    %1356 = vmatpush1.bf16.msra.mxu0 0
    %1357 = vmatprep.subr.bf16.mxu0 0
    %1358 = vmatpush1.bf16.msra.mxu0 0
    %1359 = vmatprep.mubr.bf16.mxu0 0
    %1360 = vmatmul.mubr.bf16.gmra.mrb[0].mxu0 %v1325
    %v1361 = vpop.f32.mrb[0].mxu0
    %v1362 = vadd.f32 0.0, %v1361
    %v1363 = vpop.f32.mrb[0].mxu0
    %v1364 = vpop.f32.mrb[0].mxu0
    %v1365 = vpop.f32.mrb[0].mxu0
    %1366 = vdwg.mxu0
    %v1368 = vrot.slane %v1362, 6
    %v1370 = vadd.f32 %v496, %v1368
    %v1371 = vxor.u32 %v1370, 2147483648
    %v1372 = vmul.f32 %v1371, 1.442695
    %v1373 = vpow.pop %v1372
    %v1374 = vadd.f32 %v1373, 1.0
    %v1375 = vrcp.pop %v1374
    %v1376 = vmul.f32 1.0, %v1375
    %v1377 = vmul.f32 %v1376, 2.0
    %v1378 = vsub.f32 %v1377, 1.0
    %v1380 = vrot.slane %v1235, 6
    %v1382 = vmul.f32 %v1376, %v1380
    %1384 = vrot.lane.b32.xlu0 %v1378, 64
    %v1385 = vpop.permute.xlu0 %1384
    %v1387 = vmul.f32 %v1376, %v1385
    %1389 = vrot.lane.b32.xlu0 %v1387, 32
    %v1390 = vpop.permute.xlu0 %1389
    %v1392 = vadd.f32 %v1382, %v1390
    %v1393 = vtanh.pop %v1392
    %1395 = vrot.lane.b32.xlu0 %v1393, 64
    %v1396 = vpop.permute.xlu0 %1395
    %v1398 = vmul.f32 %v1376, %v1396
    %1400 = vrot.lane.b32.xlu0 %v1398, 32
    %v1401 = vpop.permute.xlu0 %1400
    %v1404 = vrot.slane %v1319, 6
    %1405 = vrot.lane.b32.xlu0 %v1404, 64
    %v1406 = vpop.permute.xlu0 %1405
    %v1408 = vsel %vm117, %v1401, %v1406
    %v1409 = vpack.c.bf16 %v1408, %v1408
    %v1411 = vrot.slane %v1409, 1
    %v1413 = vsel %vm614, %v1411, 0
    %1415 = vmatprep.subr.bf16.mxu0 0
    %1416 = vmatpush1.bf16.msra.mxu0 %v606
    %1417 = vmatprep.subr.bf16.mxu0 0
    %1418 = vmatpush1.bf16.msra.mxu0 %v607
    %1419 = vmatprep.subr.bf16.mxu0 0
    %1420 = vmatpush1.bf16.msra.mxu0 %v608
    %1421 = vmatprep.subr.bf16.mxu0 0
    %1422 = vmatpush1.bf16.msra.mxu0 %v609
    %1423 = vmatprep.subr.bf16.mxu0 0
    %1424 = vmatpush1.bf16.msra.mxu0 0
    %1425 = vmatprep.subr.bf16.mxu0 0
    %1426 = vmatpush1.bf16.msra.mxu0 0
    %1427 = vmatprep.subr.bf16.mxu0 0
    %1428 = vmatpush1.bf16.msra.mxu0 0
    %1429 = vmatprep.subr.bf16.mxu0 0
    %1430 = vmatpush1.bf16.msra.mxu0 0
    %1431 = vmatprep.subr.bf16.mxu0 0
    %1432 = vmatpush1.bf16.msra.mxu0 0
    %1433 = vmatprep.subr.bf16.mxu0 0
    %1434 = vmatpush1.bf16.msra.mxu0 0
    %1435 = vmatprep.subr.bf16.mxu0 0
    %1436 = vmatpush1.bf16.msra.mxu0 0
    %1437 = vmatprep.subr.bf16.mxu0 0
    %1438 = vmatpush1.bf16.msra.mxu0 0
    %1439 = vmatprep.subr.bf16.mxu0 0
    %1440 = vmatpush1.bf16.msra.mxu0 0
    %1441 = vmatprep.subr.bf16.mxu0 0
    %1442 = vmatpush1.bf16.msra.mxu0 0
    %1443 = vmatprep.subr.bf16.mxu0 0
    %1444 = vmatpush1.bf16.msra.mxu0 0
    %1445 = vmatprep.subr.bf16.mxu0 0
    %1446 = vmatpush1.bf16.msra.mxu0 0
    %1447 = vmatprep.mubr.bf16.mxu0 0
    %1448 = vmatmul.mubr.bf16.gmra.mrb[0].mxu0 %v1413
    %v1449 = vpop.f32.mrb[0].mxu0
    %v1450 = vadd.f32 %v589, %v1449
    %v1451 = vpop.f32.mrb[0].mxu0
    %v1452 = vpop.f32.mrb[0].mxu0
    %v1453 = vpop.f32.mrb[0].mxu0
    %1454 = vdwg.mxu0
    %v1455 = vxor.u32 %v1450, 2147483648
    %v1456 = vmul.f32 %v1455, 1.442695
    %v1457 = vpow.pop %v1456
    %v1458 = vadd.f32 %v1457, 1.0
    %v1459 = vrcp.pop %v1458
    %v1460 = vmul.f32 1.0, %v1459
    %v1461 = vmul.f32 %v1460, 2.0
    %v1462 = vsub.f32 %v1461, 1.0
    %v1463 = vmul.f32 %v1460, %v1313
    %1465 = vrot.lane.b32.xlu0 %v1462, 64
    %v1466 = vpop.permute.xlu0 %1465
    %v1468 = vmul.f32 %v1460, %v1466
    %1470 = vrot.lane.b32.xlu0 %v1468, 32
    %v1471 = vpop.permute.xlu0 %1470
    %v1473 = vadd.f32 %v1463, %v1471
    %v1474 = vtanh.pop %v1473
    %1476 = vrot.lane.b32.xlu0 %v1474, 64
    %v1477 = vpop.permute.xlu0 %1476
    %v1479 = vmul.f32 %v1460, %v1477
    %v1480 = vpack.c.bf16 %v1398, %v1398
    %v1482 = vrot.slane %v1480, 1
    %1483 = vrot.lane.b32.xlu0 %v1482, 32
    %v1484 = vpop.permute.xlu0 %1483
    %v1486 = vsel %vm117, %v1484, 0
    %1488 = vmatprep.subr.bf16.mxu0 0
    %1489 = vmatpush1.bf16.msra.mxu0 %v507
    %1490 = vmatprep.subr.bf16.mxu0 0
    %1491 = vmatpush1.bf16.msra.mxu0 %v508
    %1492 = vmatprep.subr.bf16.mxu0 0
    %1493 = vmatpush1.bf16.msra.mxu0 0
    %1494 = vmatprep.subr.bf16.mxu0 0
    %1495 = vmatpush1.bf16.msra.mxu0 0
    %1496 = vmatprep.subr.bf16.mxu0 0
    %1497 = vmatpush1.bf16.msra.mxu0 0
    %1498 = vmatprep.subr.bf16.mxu0 0
    %1499 = vmatpush1.bf16.msra.mxu0 0
    %1500 = vmatprep.subr.bf16.mxu0 0
    %1501 = vmatpush1.bf16.msra.mxu0 0
    %1502 = vmatprep.subr.bf16.mxu0 0
    %1503 = vmatpush1.bf16.msra.mxu0 0
    %1504 = vmatprep.subr.bf16.mxu0 0
    %1505 = vmatpush1.bf16.msra.mxu0 0
    %1506 = vmatprep.subr.bf16.mxu0 0
    %1507 = vmatpush1.bf16.msra.mxu0 0
    %1508 = vmatprep.subr.bf16.mxu0 0
    %1509 = vmatpush1.bf16.msra.mxu0 0
    %1510 = vmatprep.subr.bf16.mxu0 0
    %1511 = vmatpush1.bf16.msra.mxu0 0
    %1512 = vmatprep.subr.bf16.mxu0 0
    %1513 = vmatpush1.bf16.msra.mxu0 0
    %1514 = vmatprep.subr.bf16.mxu0 0
    %1515 = vmatpush1.bf16.msra.mxu0 0
    %1516 = vmatprep.subr.bf16.mxu0 0
    %1517 = vmatpush1.bf16.msra.mxu0 0
    %1518 = vmatprep.subr.bf16.mxu0 0
    %1519 = vmatpush1.bf16.msra.mxu0 0
    %1520 = vmatprep.mubr.bf16.mxu0 0
    %1521 = vmatmul.mubr.bf16.gmra.mrb[0].mxu0 %v1486
    %v1522 = vpop.f32.mrb[0].mxu0
    %v1523 = vadd.f32 0.0, %v1522
    %v1524 = vpop.f32.mrb[0].mxu0
    %v1525 = vpop.f32.mrb[0].mxu0
    %v1526 = vpop.f32.mrb[0].mxu0
    %1527 = vdwg.mxu0
    %v1529 = vrot.slane %v1523, 4
    %v1531 = vadd.f32 %v496, %v1529
    %v1532 = vxor.u32 %v1531, 2147483648
    %v1533 = vmul.f32 %v1532, 1.442695
    %v1534 = vpow.pop %v1533
    %v1535 = vadd.f32 %v1534, 1.0
    %v1536 = vrcp.pop %v1535
    %v1537 = vmul.f32 1.0, %v1536
    %v1538 = vmul.f32 %v1537, 2.0
    %v1539 = vsub.f32 %v1538, 1.0
    %v1541 = vrot.slane %v1392, 6
    %v1543 = vmul.f32 %v1537, %v1541
    %1545 = vrot.lane.b32.xlu0 %v1539, 64
    %v1546 = vpop.permute.xlu0 %1545
    %v1548 = vmul.f32 %v1537, %v1546
    %1550 = vrot.lane.b32.xlu0 %v1548, 32
    %v1551 = vpop.permute.xlu0 %1550
    %v1553 = vadd.f32 %v1543, %v1551
    %v1554 = vtanh.pop %v1553
    %1556 = vrot.lane.b32.xlu0 %v1554, 64
    %v1557 = vpop.permute.xlu0 %1556
    %v1559 = vmul.f32 %v1537, %v1557
    %1561 = vrot.lane.b32.xlu0 %v1559, 32
    %v1562 = vpop.permute.xlu0 %1561
    %v1565 = vrot.slane %v1479, 4
    %1566 = vrot.lane.b32.xlu0 %v1565, 64
    %v1567 = vpop.permute.xlu0 %1566
    %v1569 = vsel %vm117, %v1562, %v1567
    %v1570 = vpack.c.bf16 %v1569, %v1569
    %v1572 = vrot.slane %v1570, 2
    %v1574 = vsel %vm614, %v1572, 0
    %1576 = vmatprep.subr.bf16.mxu0 0
    %1577 = vmatpush1.bf16.msra.mxu0 %v606
    %1578 = vmatprep.subr.bf16.mxu0 0
    %1579 = vmatpush1.bf16.msra.mxu0 %v607
    %1580 = vmatprep.subr.bf16.mxu0 0
    %1581 = vmatpush1.bf16.msra.mxu0 %v608
    %1582 = vmatprep.subr.bf16.mxu0 0
    %1583 = vmatpush1.bf16.msra.mxu0 %v609
    %1584 = vmatprep.subr.bf16.mxu0 0
    %1585 = vmatpush1.bf16.msra.mxu0 0
    %1586 = vmatprep.subr.bf16.mxu0 0
    %1587 = vmatpush1.bf16.msra.mxu0 0
    %1588 = vmatprep.subr.bf16.mxu0 0
    %1589 = vmatpush1.bf16.msra.mxu0 0
    %1590 = vmatprep.subr.bf16.mxu0 0
    %1591 = vmatpush1.bf16.msra.mxu0 0
    %1592 = vmatprep.subr.bf16.mxu0 0
    %1593 = vmatpush1.bf16.msra.mxu0 0
    %1594 = vmatprep.subr.bf16.mxu0 0
    %1595 = vmatpush1.bf16.msra.mxu0 0
    %1596 = vmatprep.subr.bf16.mxu0 0
    %1597 = vmatpush1.bf16.msra.mxu0 0
    %1598 = vmatprep.subr.bf16.mxu0 0
    %1599 = vmatpush1.bf16.msra.mxu0 0
    %1600 = vmatprep.subr.bf16.mxu0 0
    %1601 = vmatpush1.bf16.msra.mxu0 0
    %1602 = vmatprep.subr.bf16.mxu0 0
    %1603 = vmatpush1.bf16.msra.mxu0 0
    %1604 = vmatprep.subr.bf16.mxu0 0
    %1605 = vmatpush1.bf16.msra.mxu0 0
    %1606 = vmatprep.subr.bf16.mxu0 0
    %1607 = vmatpush1.bf16.msra.mxu0 0
    %1608 = vmatprep.mubr.bf16.mxu0 0
    %1609 = vmatmul.mubr.bf16.gmra.mrb[0].mxu0 %v1574
    %v1610 = vpop.f32.mrb[0].mxu0
    %v1611 = vadd.f32 %v589, %v1610
    %v1612 = vpop.f32.mrb[0].mxu0
    %v1613 = vpop.f32.mrb[0].mxu0
    %v1614 = vpop.f32.mrb[0].mxu0
    %1615 = vdwg.mxu0
    %v1616 = vxor.u32 %v1611, 2147483648
    %v1617 = vmul.f32 %v1616, 1.442695
    %v1618 = vpow.pop %v1617
    %v1619 = vadd.f32 %v1618, 1.0
    %v1620 = vrcp.pop %v1619
    %v1621 = vmul.f32 1.0, %v1620
    %v1622 = vmul.f32 %v1621, 2.0
    %v1623 = vsub.f32 %v1622, 1.0
    %v1624 = vmul.f32 %v1621, %v1473
    %1626 = vrot.lane.b32.xlu0 %v1623, 64
    %v1627 = vpop.permute.xlu0 %1626
    %v1629 = vmul.f32 %v1621, %v1627
    %1631 = vrot.lane.b32.xlu0 %v1629, 32
    %v1632 = vpop.permute.xlu0 %1631
    %v1634 = vadd.f32 %v1624, %v1632
    %v1635 = vtanh.pop %v1634
    %1637 = vrot.lane.b32.xlu0 %v1635, 64
    %v1638 = vpop.permute.xlu0 %1637
    %v1640 = vmul.f32 %v1621, %v1638
    %v1641 = vpack.c.bf16 %v1559, %v1559
    %v1643 = vrot.slane %v1641, 2
    %1644 = vrot.lane.b32.xlu0 %v1643, 32
    %v1645 = vpop.permute.xlu0 %1644
    %v1647 = vsel %vm117, %v1645, 0
    %1649 = vmatprep.subr.bf16.mxu0 0
    %1650 = vmatpush1.bf16.msra.mxu0 %v507
    %1651 = vmatprep.subr.bf16.mxu0 0
    %1652 = vmatpush1.bf16.msra.mxu0 %v508
    %1653 = vmatprep.subr.bf16.mxu0 0
    %1654 = vmatpush1.bf16.msra.mxu0 0
    %1655 = vmatprep.subr.bf16.mxu0 0
    %1656 = vmatpush1.bf16.msra.mxu0 0
    %1657 = vmatprep.subr.bf16.mxu0 0
    %1658 = vmatpush1.bf16.msra.mxu0 0
    %1659 = vmatprep.subr.bf16.mxu0 0
    %1660 = vmatpush1.bf16.msra.mxu0 0
    %1661 = vmatprep.subr.bf16.mxu0 0
    %1662 = vmatpush1.bf16.msra.mxu0 0
    %1663 = vmatprep.subr.bf16.mxu0 0
    %1664 = vmatpush1.bf16.msra.mxu0 0
    %1665 = vmatprep.subr.bf16.mxu0 0
    %1666 = vmatpush1.bf16.msra.mxu0 0
    %1667 = vmatprep.subr.bf16.mxu0 0
    %1668 = vmatpush1.bf16.msra.mxu0 0
    %1669 = vmatprep.subr.bf16.mxu0 0
    %1670 = vmatpush1.bf16.msra.mxu0 0
    %1671 = vmatprep.subr.bf16.mxu0 0
    %1672 = vmatpush1.bf16.msra.mxu0 0
    %1673 = vmatprep.subr.bf16.mxu0 0
    %1674 = vmatpush1.bf16.msra.mxu0 0
    %1675 = vmatprep.subr.bf16.mxu0 0
    %1676 = vmatpush1.bf16.msra.mxu0 0
    %1677 = vmatprep.subr.bf16.mxu0 0
    %1678 = vmatpush1.bf16.msra.mxu0 0
    %1679 = vmatprep.subr.bf16.mxu0 0
    %1680 = vmatpush1.bf16.msra.mxu0 0
    %1681 = vmatprep.mubr.bf16.mxu0 0
    %1682 = vmatmul.mubr.bf16.gmra.mrb[0].mxu0 %v1647
    %v1683 = vpop.f32.mrb[0].mxu0
    %v1684 = vadd.f32 0.0, %v1683
    %v1685 = vpop.f32.mrb[0].mxu0
    %v1686 = vpop.f32.mrb[0].mxu0
    %v1687 = vpop.f32.mrb[0].mxu0
    %1688 = vdwg.mxu0
    %v1690 = vrot.slane %v1684, 2
    %v1692 = vadd.f32 %v496, %v1690
    %v1693 = vxor.u32 %v1692, 2147483648
    %v1694 = vmul.f32 %v1693, 1.442695
    %v1695 = vpow.pop %v1694
    %v1696 = vadd.f32 %v1695, 1.0
    %v1697 = vrcp.pop %v1696
    %v1698 = vmul.f32 1.0, %v1697
    %v1699 = vmul.f32 %v1698, 2.0
    %v1700 = vsub.f32 %v1699, 1.0
    %v1702 = vrot.slane %v1553, 6
    %v1704 = vmul.f32 %v1698, %v1702
    %1706 = vrot.lane.b32.xlu0 %v1700, 64
    %v1707 = vpop.permute.xlu0 %1706
    %v1709 = vmul.f32 %v1698, %v1707
    %1711 = vrot.lane.b32.xlu0 %v1709, 32
    %v1712 = vpop.permute.xlu0 %1711
    %v1714 = vadd.f32 %v1704, %v1712
    %v1715 = vtanh.pop %v1714
    %1717 = vrot.lane.b32.xlu0 %v1715, 64
    %v1718 = vpop.permute.xlu0 %1717
    %v1720 = vmul.f32 %v1698, %v1718
    %1722 = vrot.lane.b32.xlu0 %v1720, 32
    %v1723 = vpop.permute.xlu0 %1722
    %v1726 = vrot.slane %v1640, 2
    %1727 = vrot.lane.b32.xlu0 %v1726, 64
    %v1728 = vpop.permute.xlu0 %1727
    %v1730 = vsel %vm117, %v1723, %v1728
    %v1731 = vpack.c.bf16 %v1730, %v1730
    %v1733 = vrot.slane %v1731, 3
    %v1735 = vsel %vm614, %v1733, 0
    %1737 = vmatprep.subr.bf16.mxu0 0
    %1738 = vmatpush1.bf16.msra.mxu0 %v606
    %1739 = vmatprep.subr.bf16.mxu0 0
    %1740 = vmatpush1.bf16.msra.mxu0 %v607
    %1741 = vmatprep.subr.bf16.mxu0 0
    %1742 = vmatpush1.bf16.msra.mxu0 %v608
    %1743 = vmatprep.subr.bf16.mxu0 0
    %1744 = vmatpush1.bf16.msra.mxu0 %v609
    %1745 = vmatprep.subr.bf16.mxu0 0
    %1746 = vmatpush1.bf16.msra.mxu0 0
    %1747 = vmatprep.subr.bf16.mxu0 0
    %1748 = vmatpush1.bf16.msra.mxu0 0
    %1749 = vmatprep.subr.bf16.mxu0 0
    %1750 = vmatpush1.bf16.msra.mxu0 0
    %1751 = vmatprep.subr.bf16.mxu0 0
    %1752 = vmatpush1.bf16.msra.mxu0 0
    %1753 = vmatprep.subr.bf16.mxu0 0
    %1754 = vmatpush1.bf16.msra.mxu0 0
    %1755 = vmatprep.subr.bf16.mxu0 0
    %1756 = vmatpush1.bf16.msra.mxu0 0
    %1757 = vmatprep.subr.bf16.mxu0 0
    %1758 = vmatpush1.bf16.msra.mxu0 0
    %1759 = vmatprep.subr.bf16.mxu0 0
    %1760 = vmatpush1.bf16.msra.mxu0 0
    %1761 = vmatprep.subr.bf16.mxu0 0
    %1762 = vmatpush1.bf16.msra.mxu0 0
    %1763 = vmatprep.subr.bf16.mxu0 0
    %1764 = vmatpush1.bf16.msra.mxu0 0
    %1765 = vmatprep.subr.bf16.mxu0 0
    %1766 = vmatpush1.bf16.msra.mxu0 0
    %1767 = vmatprep.subr.bf16.mxu0 0
    %1768 = vmatpush1.bf16.msra.mxu0 0
    %1769 = vmatprep.mubr.bf16.mxu0 0
    %1770 = vmatmul.mubr.bf16.gmra.mrb[0].mxu0 %v1735
    %v1771 = vpop.f32.mrb[0].mxu0
    %v1772 = vadd.f32 %v589, %v1771
    %v1773 = vpop.f32.mrb[0].mxu0
    %v1774 = vpop.f32.mrb[0].mxu0
    %v1775 = vpop.f32.mrb[0].mxu0
    %1776 = vdwg.mxu0
    %v1777 = vxor.u32 %v1772, 2147483648
    %v1778 = vmul.f32 %v1777, 1.442695
    %v1779 = vpow.pop %v1778
    %v1780 = vadd.f32 %v1779, 1.0
    %v1781 = vrcp.pop %v1780
    %v1782 = vmul.f32 1.0, %v1781
    %v1783 = vmul.f32 %v1782, 2.0
    %v1784 = vsub.f32 %v1783, 1.0
    %v1785 = vmul.f32 %v1782, %v1634
    %1787 = vrot.lane.b32.xlu0 %v1784, 64
    %v1788 = vpop.permute.xlu0 %1787
    %v1790 = vmul.f32 %v1782, %v1788
    %1792 = vrot.lane.b32.xlu0 %v1790, 32
    %v1793 = vpop.permute.xlu0 %1792
    %v1795 = vadd.f32 %v1785, %v1793
    %v1796 = vtanh.pop %v1795
    %1798 = vrot.lane.b32.xlu0 %v1796, 64
    %v1799 = vpop.permute.xlu0 %1798
    %v1801 = vmul.f32 %v1782, %v1799
    %v1802 = vrot.slane %v842, 6
    %v1804 = vrot.slane %v1003, 4
    %v1806 = vrot.slane %v1164, 2
    %v1808 = vrot.slane %v1479, 6
    %v1810 = vrot.slane %v1640, 4
    %v1813 = vrot.slane %v1801, 2
    %vm1815 = vcmask 1041408
    %v1816 = vsel %vm1815, %v682, %v1802
    %v1817 = vsel %vm72, %v1816, %v1804
    %vm1818 = vcmask 1045504
    %v1819 = vsel %vm1818, %v1817, %v1806
    %v1820 = vsel %vm1815, %v1319, %v1808
    %v1821 = vsel %vm72, %v1820, %v1810
    %v1822 = vsel %vm1818, %v1821, %v1813
    %v1823 = vlaneseq
    %v1824 = vshrl.u32 %v1823, 7
    %v1825 = vsub.s32 1, %v1824
    %v1826 = vrot.slane %v42, %v1825
    %1828 = vrot.lane.b32.xlu0 %v1826, 96
    %v1829 = vpop.permute.xlu0 %1828
    %v1831 = vmul.f32 %v1819, %v1829
    %v1832 = vmul.f32 %v1822, %v1829
    %1835 = vrot.lane.b32.xlu0 %v1831, 32
    %v1836 = vpop.permute.xlu0 %1835
    %1837 = vrot.lane.b32.xlu0 %v1832, 32
    %v1838 = vpop.permute.xlu0 %1837
    %v1841 = vsel %vm117, %v1836, 0.0
    %1842 = vadd.xlane.f32.xlu0 %v1841
    %v1843 = vpop.xlane.xlu0 %1842
    %v1844 = vsel %vm117, %v1838, 0.0
    %1845 = vadd.xlane.f32.xlu0 %v1844
    %v1846 = vpop.xlane.xlu0 %1845
    %s1847 = sld [smem:[#allocation2]]
    %v1848 = vstv %s1847
    %v1849 = vadd.f32 %v1843, %v1848
    %v1850 = vadd.f32 %v1846, %v1848
    %v1851 = vxor.u32 %v1849, 2147483648
    %v1852 = vxor.u32 %v1850, 2147483648
    %v1853 = vmul.f32 %v1851, 1.442695
    %v1854 = vpow.pop %v1853
    %v1855 = vmul.f32 %v1852, 1.442695
    %v1856 = vpow.pop %v1855
    %v1857 = vadd.f32 %v1854, 1.0
    %v1858 = vadd.f32 %v1856, 1.0
    %v1859 = vrcp.pop %v1857
    %v1860 = vmul.f32 1.0, %v1859
    %v1861 = vrcp.pop %v1858
    %v1862 = vmul.f32 1.0, %v1861
    %vm1863 = vcmask 7168
    %1864 = vst.msk [vmem:[%s6] sm:$0xff] %vm1863, %v1860
    %1865 = vst.msk [vmem:[%s6 + $0x8] sm:$0xff] %vm1863, %v1862
    // Predicated region
    $region30: #{tpu_custom_call.1} parent=1 // pred_check
      _
    $region31: #{tpu_custom_call.1} parent=1 // pred_check_branch
      %1867 = sbr.rel (0) target = $region33
    $region32: #{tpu_custom_call.1} parent=1 // pred_region
      _
    $region33: #{tpu_custom_call.1} parent=1 // pred_fallthru
      _
    // Predicated region
    $region34: #{tpu_custom_call.1} parent=1 // pred_check
      _
    $region35: #{tpu_custom_call.1} parent=1 // pred_check_branch
      %1869 = sbr.rel (0) target = $region37
    $region36: #{tpu_custom_call.1} parent=1 // pred_region
      _
    $region37: #{tpu_custom_call.1} parent=1 // pred_fallthru
      _
    %1870 = vsyncpa [#allocation4], 1

</llo_original>
